<compile_context>
chip_gen: v5e
topology: v5e:2x2
jax: 0.10.0
libtpu: 0.0.40
codegen_flags: <defaults>
</compile_context>

<pallas_src>
import functools
import math

import numpy as np
import jax
import jax.numpy as jnp
from jax.experimental import pallas as pl
from jax.experimental.pallas import tpu as pltpu


# ----------------------------------------------------------------------------
# Fused per-iteration kernel: CNN block + residual + data-consistency update
# ----------------------------------------------------------------------------
def _dccnn_iter_kernel(*refs, n_conv, width):
    """One DC-CNN iteration for one batch element (grid step).

    In-kernel layout: (channels, H*W) -- channels on sublanes, the flattened
    spatial axis (lane-dense) on lanes.
    """
    x_ref, mk_ref, m2_ref, tapm_ref, mr_ref, mi_ref, mu_ref = refs[:7]
    wb_refs = refs[7:7 + 2 * n_conv]
    o_ref = refs[-1]

    x = x_ref[0]                       # (2, HW)  row0 = real, row1 = imag
    hw = x.shape[-1]
    tap_masks = tapm_ref[...]          # (9, HW)  boundary masks for the 3x3 taps

    # ---------------- CNN block (residual) ----------------------------------
    act = x
    for j in range(n_conv):
        w = wb_refs[2 * j][...]        # (Cout, 9*Cin)
        bias = wb_refs[2 * j + 1][...]  # (Cout, 1)
        parts = []
        for t in range(9):
            dh, dw = t // 3 - 1, t % 3 - 1
            shift = dh * width + dw
            if shift == 0:
                parts.append(act)      # center tap: no shift, mask is all-ones
            else:
                rolled = pltpu.roll(act, (-shift) % hw, axis=1)
                parts.append(rolled * tap_masks[t:t + 1, :])
        patches = jnp.concatenate(parts, axis=0)                # (9*Cin, HW)
        act = jnp.dot(w, patches, preferred_element_type=jnp.float32) + bias
        if j < n_conv - 1:
            act = jnp.maximum(act, 0.0)

    xp = x + act                        # x += x_cnn       (2, HW)

    # ---------------- data-consistency update -------------------------------
    #   x_out = x + mu * IFFT2( mask*k0 - mask^2 * FFT2(x) )     (norm='ortho')
    ft_r = mr_ref[...]                  # Re kron(F_H, F_W)   (HW, HW)
    ft_i = mi_ref[...]                  # Im kron(F_H, F_W)
    mk = mk_ref[0]                      # (2, HW)  mask * k0  (hoisted)
    m2 = m2_ref[0]                      # (1, HW)  mask^2     (hoisted)
    mu = mu_ref[0, 0]                   # scalar from SMEM

    fr = jnp.dot(xp, ft_r, preferred_element_type=jnp.float32)  # [xr@Mr, xi@Mr]
    fi = jnp.dot(xp, ft_i, preferred_element_type=jnp.float32)  # [xr@Mi, xi@Mi]
    k_r = fr[0:1] - fi[1:2]
    k_i = fi[0:1] + fr[1:2]
    h_r = mk[0:1] - m2 * k_r
    h_i = mk[1:2] - m2 * k_i
    h = jnp.concatenate([h_r, h_i], axis=0)                      # (2, HW)
    gr = jnp.dot(h, ft_r, preferred_element_type=jnp.float32)    # [hr@Mr, hi@Mr]
    gi = jnp.dot(h, ft_i, preferred_element_type=jnp.float32)    # [hr@Mi, hi@Mi]
    upd = jnp.concatenate([gr[0:1] + gi[1:2],                    # Re(h @ conj(M))
                           gr[1:2] - gi[0:1]], axis=0)           # Im(h @ conj(M))

    o_ref[0] = (xp + mu * upd).astype(o_ref.dtype)


def _dccnn_iteration(xf, mk, m2, tapm, mr, mi, mu_arr, layer_params, width):
    b_sz, _, hw = xf.shape
    n_conv = len(layer_params)

    kern = functools.partial(_dccnn_iter_kernel, n_conv=n_conv, width=width)

    in_specs = [
        pl.BlockSpec((1, 2, hw), lambda bi: (bi, 0, 0)),      # x
        pl.BlockSpec((1, 2, hw), lambda bi: (bi, 0, 0)),      # mask * k0
        pl.BlockSpec((1, 1, hw), lambda bi: (bi, 0, 0)),      # mask^2
        pl.BlockSpec((9, hw), lambda bi: (0, 0)),             # conv boundary masks
        pl.BlockSpec((hw, hw), lambda bi: (0, 0)),            # Re kron(F_H, F_W)
        pl.BlockSpec((hw, hw), lambda bi: (0, 0)),            # Im kron(F_H, F_W)
        pl.BlockSpec(memory_space=pltpu.MemorySpace.SMEM),    # mu scalar
    ]
    args = [xf, mk, m2, tapm, mr, mi, mu_arr]
    for w, bias in layer_params:
        in_specs.append(pl.BlockSpec(w.shape, lambda bi: (0, 0)))
        in_specs.append(pl.BlockSpec(bias.shape, lambda bi: (0, 0)))
        args.extend([w, bias])

    return pl.pallas_call(
        kern,
        out_shape=jax.ShapeDtypeStruct((b_sz, 2, hw), jnp.float32),
        grid=(b_sz,),
        in_specs=in_specs,
        out_specs=pl.BlockSpec((1, 2, hw), lambda bi: (bi, 0, 0)),
        compiler_params=pltpu.CompilerParams(
            dimension_semantics=("parallel",)),
    )(*args)


# ----------------------------------------------------------------------------
# Host-side precomputation (trace-time constants)
# ----------------------------------------------------------------------------
def _dft_matrix(n):
    """Ortho-normalized (symmetric, unitary) DFT matrix, float64 precision."""
    idx = np.arange(n)
    ang = -2.0 * np.pi * np.outer(idx, idx) / n
    return (np.cos(ang) + 1j * np.sin(ang)) / np.sqrt(n)


def dft2_kron_matrices(h, w):
    """2-D DFT as one (H*W, H*W) operator on row-major flattened images:
    fft2(X).flatten() == X.flatten() @ kron(F_H, F_W)  (operator is symmetric)."""
    m = np.kron(_dft_matrix(h), _dft_matrix(w))
    return (jnp.asarray(m.real, dtype=jnp.float32),
            jnp.asarray(m.imag, dtype=jnp.float32))


def conv_tap_masks(h, w):
    """(9, H*W) validity masks for the 3x3 same-padding taps (zero outside)."""
    i = np.arange(h * w) // w
    j = np.arange(h * w) % w
    masks = []
    for t in range(9):
        dh, dw = t // 3 - 1, t % 3 - 1
        valid = (i + dh >= 0) & (i + dh < h) & (j + dw >= 0) & (j + dw < w)
        masks.append(valid.astype(np.float32))
    return jnp.asarray(np.stack(masks, axis=0))


def init_params(key, n_iter, n_conv, n_filters, channel_in=2):
    """Conv weights stored MXU-ready as (Cout, 9*Cin); column ((kh*3+kw)*Cin + ci)
    corresponds to torch Conv2d weight [co, ci, kh, kw]. Bias is (Cout, 1)."""
    params = []
    for _ in range(n_iter):
        layers = []
        cin = channel_in
        for j in range(n_conv):
            cout = channel_in if j == n_conv - 1 else n_filters
            key, k_w, k_b = jax.random.split(key, 3)
            bound = 1.0 / math.sqrt(cin * 9)
            w = jax.random.uniform(k_w, (cout, 9 * cin), jnp.float32, -bound, bound)
            b = jax.random.uniform(k_b, (cout, 1), jnp.float32, -bound, bound)
            layers.append((w, b))
            cin = cout
        params.append(layers)
    return params


# ----------------------------------------------------------------------------
# Full DCCNN forward
# ----------------------------------------------------------------------------
def dccnn_forward(x, k, m, params, mu):
    """x, k: (B,2,H,W) float32 (real/imag channels); m: (B,1,H,W) sampling mask."""
    batch, _, height, width = x.shape
    hw = height * width

    mr, mi = dft2_kron_matrices(height, width)
    tapm = conv_tap_masks(height, width)
    mu_arr = jnp.asarray(mu, jnp.float32).reshape(1, 1)

    xf = x.reshape(batch, 2, hw)
    mk = (m * k).reshape(batch, 2, hw)     # mask * k0   (hoisted out of the loop)
    m2 = (m * m).reshape(batch, 1, hw)     # mask^2      (exact for any mask)

    for layer_params in params:
        xf = _dccnn_iteration(xf, mk, m2, tapm, mr, mi, mu_arr,
                              layer_params, width)
    return xf.reshape(batch, 2, height, width)


if __name__ == "__main__":
    key = jax.random.PRNGKey(0)
    B, H, W = 2, 16, 16
    n_iter, n_conv, n_filters = 2, 3, 32    # small config of DCCNN(n_iter, n_conv, n_filters)
    kx, kk, km, kp = jax.random.split(key, 4)
    x = jax.random.normal(kx, (B, 2, H, W), jnp.float32)
    k = jax.random.normal(kk, (B, 2, H, W), jnp.float32)
    m = jax.random.bernoulli(km, 0.5, (B, 1, H, W)).astype(jnp.float32)
    params = init_params(kp, n_iter, n_conv, n_filters)

    fwd = jax.jit(functools.partial(dccnn_forward, mu=0.5))
    out = fwd(x, k, m, params)
    jax.block_until_ready(out)
    assert out.shape == (B, 2, H, W)
    print("KERNEL_OK")
</pallas_src>

<mosaic_0001>
module attributes {stable_mosaic.version = 11 : i64} {
  func.func @_dccnn_iter_kernel(%arg0: i32, %arg1: memref<1x2x256xf32, #tpu.memory_space<vmem>>, %arg2: memref<1x2x256xf32, #tpu.memory_space<vmem>>, %arg3: memref<1x1x256xf32, #tpu.memory_space<vmem>>, %arg4: memref<9x256xf32, #tpu.memory_space<vmem>>, %arg5: memref<256x256xf32, #tpu.memory_space<vmem>>, %arg6: memref<256x256xf32, #tpu.memory_space<vmem>>, %arg7: memref<1x1xf32, #tpu.memory_space<smem>>, %arg8: memref<32x18xf32, #tpu.memory_space<vmem>>, %arg9: memref<32x1xf32, #tpu.memory_space<vmem>>, %arg10: memref<32x288xf32, #tpu.memory_space<vmem>>, %arg11: memref<32x1xf32, #tpu.memory_space<vmem>>, %arg12: memref<2x288xf32, #tpu.memory_space<vmem>>, %arg13: memref<2x1xf32, #tpu.memory_space<vmem>>, %arg14: memref<1x2x256xf32, #tpu.memory_space<vmem>>) attributes {dimension_semantics = [#tpu.dimension_semantics<parallel>], iteration_bounds = array<i64: 2>, scalar_prefetch = 0 : i64, scratch_operands = 0 : i64, tpu.core_type = #tpu.core_type<tc>, window_params = [{transform_indices = @transform_0, window_bounds = array<i64: 1, 2, 256>}, {transform_indices = @transform_1, window_bounds = array<i64: 1, 2, 256>}, {transform_indices = @transform_2, window_bounds = array<i64: 1, 1, 256>}, {pipeline_mode = #tpu.pipeline_mode<synchronous>, transform_indices = @transform_3, window_bounds = array<i64: 9, 256>}, {pipeline_mode = #tpu.pipeline_mode<synchronous>, transform_indices = @transform_4, window_bounds = array<i64: 256, 256>}, {pipeline_mode = #tpu.pipeline_mode<synchronous>, transform_indices = @transform_5, window_bounds = array<i64: 256, 256>}, {transform_indices = @transform_6, window_bounds = array<i64: 1, 1>}, {pipeline_mode = #tpu.pipeline_mode<synchronous>, transform_indices = @transform_7, window_bounds = array<i64: 32, 18>}, {pipeline_mode = #tpu.pipeline_mode<synchronous>, transform_indices = @transform_8, window_bounds = array<i64: 32, 1>}, {pipeline_mode = #tpu.pipeline_mode<synchronous>, transform_indices = @transform_9, window_bounds = array<i64: 32, 288>}, {pipeline_mode = #tpu.pipeline_mode<synchronous>, transform_indices = @transform_10, window_bounds = array<i64: 32, 1>}, {pipeline_mode = #tpu.pipeline_mode<synchronous>, transform_indices = @transform_11, window_bounds = array<i64: 2, 288>}, {pipeline_mode = #tpu.pipeline_mode<synchronous>, transform_indices = @transform_12, window_bounds = array<i64: 2, 1>}, {transform_indices = @transform_13, window_bounds = array<i64: 1, 2, 256>}]} {
    %c0 = arith.constant 0 : index
    %c0_0 = arith.constant 0 : index
    %c0_1 = arith.constant 0 : index
    %0 = vector.load %arg1[%c0, %c0_0, %c0_1] : memref<1x2x256xf32, #tpu.memory_space<vmem>>, vector<1x2x256xf32>
    %1 = vector.shape_cast %0 : vector<1x2x256xf32> to vector<2x256xf32>
    %c0_2 = arith.constant 0 : index
    %c0_3 = arith.constant 0 : index
    %2 = vector.load %arg4[%c0_2, %c0_3] : memref<9x256xf32, #tpu.memory_space<vmem>>, vector<9x256xf32>
    %c0_4 = arith.constant 0 : index
    %c0_5 = arith.constant 0 : index
    %3 = vector.load %arg8[%c0_4, %c0_5] : memref<32x18xf32, #tpu.memory_space<vmem>>, vector<32x18xf32>
    %c0_6 = arith.constant 0 : index
    %c0_7 = arith.constant 0 : index
    %4 = vector.load %arg9[%c0_6, %c0_7] : memref<32x1xf32, #tpu.memory_space<vmem>>, vector<32x1xf32>
    %c17_i32 = arith.constant 17 : i32
    %5 = tpu.dynamic_rotate %1 by %c17_i32 dim 1 : vector<2x256xf32>, i32 -> vector<2x256xf32>
    %6 = vector.extract_strided_slice %2 {offsets = [0, 0], sizes = [1, 256], strides = [1, 1]} : vector<9x256xf32> to vector<1x256xf32>
    %7 = vector.broadcast %6 : vector<1x256xf32> to vector<2x256xf32>
    %8 = arith.mulf %5, %7 : vector<2x256xf32>
    %c16_i32 = arith.constant 16 : i32
    %9 = tpu.dynamic_rotate %1 by %c16_i32 dim 1 : vector<2x256xf32>, i32 -> vector<2x256xf32>
    %10 = vector.extract_strided_slice %2 {offsets = [1, 0], sizes = [1, 256], strides = [1, 1]} : vector<9x256xf32> to vector<1x256xf32>
    %11 = vector.broadcast %10 : vector<1x256xf32> to vector<2x256xf32>
    %12 = arith.mulf %9, %11 : vector<2x256xf32>
    %c15_i32 = arith.constant 15 : i32
    %13 = tpu.dynamic_rotate %1 by %c15_i32 dim 1 : vector<2x256xf32>, i32 -> vector<2x256xf32>
    %14 = vector.extract_strided_slice %2 {offsets = [2, 0], sizes = [1, 256], strides = [1, 1]} : vector<9x256xf32> to vector<1x256xf32>
    %15 = vector.broadcast %14 : vector<1x256xf32> to vector<2x256xf32>
    %16 = arith.mulf %13, %15 : vector<2x256xf32>
    %c1_i32 = arith.constant 1 : i32
    %17 = tpu.dynamic_rotate %1 by %c1_i32 dim 1 : vector<2x256xf32>, i32 -> vector<2x256xf32>
    %18 = vector.extract_strided_slice %2 {offsets = [3, 0], sizes = [1, 256], strides = [1, 1]} : vector<9x256xf32> to vector<1x256xf32>
    %19 = vector.broadcast %18 : vector<1x256xf32> to vector<2x256xf32>
    %20 = arith.mulf %17, %19 : vector<2x256xf32>
    %c255_i32 = arith.constant 255 : i32
    %21 = tpu.dynamic_rotate %1 by %c255_i32 dim 1 : vector<2x256xf32>, i32 -> vector<2x256xf32>
    %22 = vector.extract_strided_slice %2 {offsets = [5, 0], sizes = [1, 256], strides = [1, 1]} : vector<9x256xf32> to vector<1x256xf32>
    %23 = vector.broadcast %22 : vector<1x256xf32> to vector<2x256xf32>
    %24 = arith.mulf %21, %23 : vector<2x256xf32>
    %c241_i32 = arith.constant 241 : i32
    %25 = tpu.dynamic_rotate %1 by %c241_i32 dim 1 : vector<2x256xf32>, i32 -> vector<2x256xf32>
    %26 = vector.extract_strided_slice %2 {offsets = [6, 0], sizes = [1, 256], strides = [1, 1]} : vector<9x256xf32> to vector<1x256xf32>
    %27 = vector.broadcast %26 : vector<1x256xf32> to vector<2x256xf32>
    %28 = arith.mulf %25, %27 : vector<2x256xf32>
    %c240_i32 = arith.constant 240 : i32
    %29 = tpu.dynamic_rotate %1 by %c240_i32 dim 1 : vector<2x256xf32>, i32 -> vector<2x256xf32>
    %30 = vector.extract_strided_slice %2 {offsets = [7, 0], sizes = [1, 256], strides = [1, 1]} : vector<9x256xf32> to vector<1x256xf32>
    %31 = vector.broadcast %30 : vector<1x256xf32> to vector<2x256xf32>
    %32 = arith.mulf %29, %31 : vector<2x256xf32>
    %c239_i32 = arith.constant 239 : i32
    %33 = tpu.dynamic_rotate %1 by %c239_i32 dim 1 : vector<2x256xf32>, i32 -> vector<2x256xf32>
    %34 = vector.extract_strided_slice %2 {offsets = [8, 0], sizes = [1, 256], strides = [1, 1]} : vector<9x256xf32> to vector<1x256xf32>
    %35 = vector.broadcast %34 : vector<1x256xf32> to vector<2x256xf32>
    %36 = arith.mulf %33, %35 : vector<2x256xf32>
    %37 = tpu.concatenate %8, %12, %16, %20, %1, %24, %28, %32, %36 in 0 : vector<2x256xf32>, vector<2x256xf32>, vector<2x256xf32>, vector<2x256xf32>, vector<2x256xf32>, vector<2x256xf32>, vector<2x256xf32>, vector<2x256xf32>, vector<2x256xf32> -> vector<18x256xf32>
    %cst = arith.constant dense<0.000000e+00> : vector<32x256xf32>
    %38 = tpu.matmul %3, %37, %cst {dimension_numbers = #tpu.dot_dimension_numbers<[1], [0], [0], [1], [0, 0, 1, 1], [], []>} : vector<32x18xf32>, vector<18x256xf32>, vector<32x256xf32> -> vector<32x256xf32>
    %39 = vector.broadcast %4 : vector<32x1xf32> to vector<32x256xf32>
    %40 = arith.addf %38, %39 : vector<32x256xf32>
    %cst_8 = arith.constant 0.000000e+00 : f32
    %41 = vector.broadcast %cst_8 : f32 to vector<32x256xf32>
    %42 = arith.maximumf %40, %41 : vector<32x256xf32>
    %c0_9 = arith.constant 0 : index
    %c0_10 = arith.constant 0 : index
    %43 = vector.load %arg10[%c0_9, %c0_10] : memref<32x288xf32, #tpu.memory_space<vmem>>, vector<32x288xf32>
    %c0_11 = arith.constant 0 : index
    %c0_12 = arith.constant 0 : index
    %44 = vector.load %arg11[%c0_11, %c0_12] : memref<32x1xf32, #tpu.memory_space<vmem>>, vector<32x1xf32>
    %c17_i32_13 = arith.constant 17 : i32
    %45 = tpu.dynamic_rotate %42 by %c17_i32_13 dim 1 : vector<32x256xf32>, i32 -> vector<32x256xf32>
    %46 = vector.extract_strided_slice %2 {offsets = [0, 0], sizes = [1, 256], strides = [1, 1]} : vector<9x256xf32> to vector<1x256xf32>
    %47 = vector.broadcast %46 : vector<1x256xf32> to vector<32x256xf32>
    %48 = arith.mulf %45, %47 : vector<32x256xf32>
    %c16_i32_14 = arith.constant 16 : i32
    %49 = tpu.dynamic_rotate %42 by %c16_i32_14 dim 1 : vector<32x256xf32>, i32 -> vector<32x256xf32>
    %50 = vector.extract_strided_slice %2 {offsets = [1, 0], sizes = [1, 256], strides = [1, 1]} : vector<9x256xf32> to vector<1x256xf32>
    %51 = vector.broadcast %50 : vector<1x256xf32> to vector<32x256xf32>
    %52 = arith.mulf %49, %51 : vector<32x256xf32>
    %c15_i32_15 = arith.constant 15 : i32
    %53 = tpu.dynamic_rotate %42 by %c15_i32_15 dim 1 : vector<32x256xf32>, i32 -> vector<32x256xf32>
    %54 = vector.extract_strided_slice %2 {offsets = [2, 0], sizes = [1, 256], strides = [1, 1]} : vector<9x256xf32> to vector<1x256xf32>
    %55 = vector.broadcast %54 : vector<1x256xf32> to vector<32x256xf32>
    %56 = arith.mulf %53, %55 : vector<32x256xf32>
    %c1_i32_16 = arith.constant 1 : i32
    %57 = tpu.dynamic_rotate %42 by %c1_i32_16 dim 1 : vector<32x256xf32>, i32 -> vector<32x256xf32>
    %58 = vector.extract_strided_slice %2 {offsets = [3, 0], sizes = [1, 256], strides = [1, 1]} : vector<9x256xf32> to vector<1x256xf32>
    %59 = vector.broadcast %58 : vector<1x256xf32> to vector<32x256xf32>
    %60 = arith.mulf %57, %59 : vector<32x256xf32>
    %c255_i32_17 = arith.constant 255 : i32
    %61 = tpu.dynamic_rotate %42 by %c255_i32_17 dim 1 : vector<32x256xf32>, i32 -> vector<32x256xf32>
    %62 = vector.extract_strided_slice %2 {offsets = [5, 0], sizes = [1, 256], strides = [1, 1]} : vector<9x256xf32> to vector<1x256xf32>
    %63 = vector.broadcast %62 : vector<1x256xf32> to vector<32x256xf32>
    %64 = arith.mulf %61, %63 : vector<32x256xf32>
    %c241_i32_18 = arith.constant 241 : i32
    %65 = tpu.dynamic_rotate %42 by %c241_i32_18 dim 1 : vector<32x256xf32>, i32 -> vector<32x256xf32>
    %66 = vector.extract_strided_slice %2 {offsets = [6, 0], sizes = [1, 256], strides = [1, 1]} : vector<9x256xf32> to vector<1x256xf32>
    %67 = vector.broadcast %66 : vector<1x256xf32> to vector<32x256xf32>
    %68 = arith.mulf %65, %67 : vector<32x256xf32>
    %c240_i32_19 = arith.constant 240 : i32
    %69 = tpu.dynamic_rotate %42 by %c240_i32_19 dim 1 : vector<32x256xf32>, i32 -> vector<32x256xf32>
    %70 = vector.extract_strided_slice %2 {offsets = [7, 0], sizes = [1, 256], strides = [1, 1]} : vector<9x256xf32> to vector<1x256xf32>
    %71 = vector.broadcast %70 : vector<1x256xf32> to vector<32x256xf32>
    %72 = arith.mulf %69, %71 : vector<32x256xf32>
    %c239_i32_20 = arith.constant 239 : i32
    %73 = tpu.dynamic_rotate %42 by %c239_i32_20 dim 1 : vector<32x256xf32>, i32 -> vector<32x256xf32>
    %74 = vector.extract_strided_slice %2 {offsets = [8, 0], sizes = [1, 256], strides = [1, 1]} : vector<9x256xf32> to vector<1x256xf32>
    %75 = vector.broadcast %74 : vector<1x256xf32> to vector<32x256xf32>
    %76 = arith.mulf %73, %75 : vector<32x256xf32>
    %77 = tpu.concatenate %48, %52, %56, %60, %42, %64, %68, %72, %76 in 0 : vector<32x256xf32>, vector<32x256xf32>, vector<32x256xf32>, vector<32x256xf32>, vector<32x256xf32>, vector<32x256xf32>, vector<32x256xf32>, vector<32x256xf32>, vector<32x256xf32> -> vector<288x256xf32>
    %cst_21 = arith.constant dense<0.000000e+00> : vector<32x256xf32>
    %78 = tpu.matmul %43, %77, %cst_21 {dimension_numbers = #tpu.dot_dimension_numbers<[1], [0], [0], [1], [0, 0, 1, 1], [], []>} : vector<32x288xf32>, vector<288x256xf32>, vector<32x256xf32> -> vector<32x256xf32>
    %79 = vector.broadcast %44 : vector<32x1xf32> to vector<32x256xf32>
    %80 = arith.addf %78, %79 : vector<32x256xf32>
    %cst_22 = arith.constant 0.000000e+00 : f32
    %81 = vector.broadcast %cst_22 : f32 to vector<32x256xf32>
    %82 = arith.maximumf %80, %81 : vector<32x256xf32>
    %c0_23 = arith.constant 0 : index
    %c0_24 = arith.constant 0 : index
    %83 = vector.load %arg12[%c0_23, %c0_24] : memref<2x288xf32, #tpu.memory_space<vmem>>, vector<2x288xf32>
    %c0_25 = arith.constant 0 : index
    %c0_26 = arith.constant 0 : index
    %84 = vector.load %arg13[%c0_25, %c0_26] : memref<2x1xf32, #tpu.memory_space<vmem>>, vector<2x1xf32>
    %c17_i32_27 = arith.constant 17 : i32
    %85 = tpu.dynamic_rotate %82 by %c17_i32_27 dim 1 : vector<32x256xf32>, i32 -> vector<32x256xf32>
    %86 = vector.extract_strided_slice %2 {offsets = [0, 0], sizes = [1, 256], strides = [1, 1]} : vector<9x256xf32> to vector<1x256xf32>
    %87 = vector.broadcast %86 : vector<1x256xf32> to vector<32x256xf32>
    %88 = arith.mulf %85, %87 : vector<32x256xf32>
    %c16_i32_28 = arith.constant 16 : i32
    %89 = tpu.dynamic_rotate %82 by %c16_i32_28 dim 1 : vector<32x256xf32>, i32 -> vector<32x256xf32>
    %90 = vector.extract_strided_slice %2 {offsets = [1, 0], sizes = [1, 256], strides = [1, 1]} : vector<9x256xf32> to vector<1x256xf32>
    %91 = vector.broadcast %90 : vector<1x256xf32> to vector<32x256xf32>
    %92 = arith.mulf %89, %91 : vector<32x256xf32>
    %c15_i32_29 = arith.constant 15 : i32
    %93 = tpu.dynamic_rotate %82 by %c15_i32_29 dim 1 : vector<32x256xf32>, i32 -> vector<32x256xf32>
    %94 = vector.extract_strided_slice %2 {offsets = [2, 0], sizes = [1, 256], strides = [1, 1]} : vector<9x256xf32> to vector<1x256xf32>
    %95 = vector.broadcast %94 : vector<1x256xf32> to vector<32x256xf32>
    %96 = arith.mulf %93, %95 : vector<32x256xf32>
    %c1_i32_30 = arith.constant 1 : i32
    %97 = tpu.dynamic_rotate %82 by %c1_i32_30 dim 1 : vector<32x256xf32>, i32 -> vector<32x256xf32>
    %98 = vector.extract_strided_slice %2 {offsets = [3, 0], sizes = [1, 256], strides = [1, 1]} : vector<9x256xf32> to vector<1x256xf32>
    %99 = vector.broadcast %98 : vector<1x256xf32> to vector<32x256xf32>
    %100 = arith.mulf %97, %99 : vector<32x256xf32>
    %c255_i32_31 = arith.constant 255 : i32
    %101 = tpu.dynamic_rotate %82 by %c255_i32_31 dim 1 : vector<32x256xf32>, i32 -> vector<32x256xf32>
    %102 = vector.extract_strided_slice %2 {offsets = [5, 0], sizes = [1, 256], strides = [1, 1]} : vector<9x256xf32> to vector<1x256xf32>
    %103 = vector.broadcast %102 : vector<1x256xf32> to vector<32x256xf32>
    %104 = arith.mulf %101, %103 : vector<32x256xf32>
    %c241_i32_32 = arith.constant 241 : i32
    %105 = tpu.dynamic_rotate %82 by %c241_i32_32 dim 1 : vector<32x256xf32>, i32 -> vector<32x256xf32>
    %106 = vector.extract_strided_slice %2 {offsets = [6, 0], sizes = [1, 256], strides = [1, 1]} : vector<9x256xf32> to vector<1x256xf32>
    %107 = vector.broadcast %106 : vector<1x256xf32> to vector<32x256xf32>
    %108 = arith.mulf %105, %107 : vector<32x256xf32>
    %c240_i32_33 = arith.constant 240 : i32
    %109 = tpu.dynamic_rotate %82 by %c240_i32_33 dim 1 : vector<32x256xf32>, i32 -> vector<32x256xf32>
    %110 = vector.extract_strided_slice %2 {offsets = [7, 0], sizes = [1, 256], strides = [1, 1]} : vector<9x256xf32> to vector<1x256xf32>
    %111 = vector.broadcast %110 : vector<1x256xf32> to vector<32x256xf32>
    %112 = arith.mulf %109, %111 : vector<32x256xf32>
    %c239_i32_34 = arith.constant 239 : i32
    %113 = tpu.dynamic_rotate %82 by %c239_i32_34 dim 1 : vector<32x256xf32>, i32 -> vector<32x256xf32>
    %114 = vector.extract_strided_slice %2 {offsets = [8, 0], sizes = [1, 256], strides = [1, 1]} : vector<9x256xf32> to vector<1x256xf32>
    %115 = vector.broadcast %114 : vector<1x256xf32> to vector<32x256xf32>
    %116 = arith.mulf %113, %115 : vector<32x256xf32>
    %117 = tpu.concatenate %88, %92, %96, %100, %82, %104, %108, %112, %116 in 0 : vector<32x256xf32>, vector<32x256xf32>, vector<32x256xf32>, vector<32x256xf32>, vector<32x256xf32>, vector<32x256xf32>, vector<32x256xf32>, vector<32x256xf32>, vector<32x256xf32> -> vector<288x256xf32>
    %cst_35 = arith.constant dense<0.000000e+00> : vector<2x256xf32>
    %118 = tpu.matmul %83, %117, %cst_35 {dimension_numbers = #tpu.dot_dimension_numbers<[1], [0], [0], [1], [0, 0, 1, 1], [], []>} : vector<2x288xf32>, vector<288x256xf32>, vector<2x256xf32> -> vector<2x256xf32>
    %119 = vector.broadcast %84 : vector<2x1xf32> to vector<2x256xf32>
    %120 = arith.addf %118, %119 : vector<2x256xf32>
    %121 = arith.addf %1, %120 : vector<2x256xf32>
    %c0_36 = arith.constant 0 : index
    %c0_37 = arith.constant 0 : index
    %122 = vector.load %arg5[%c0_36, %c0_37] : memref<256x256xf32, #tpu.memory_space<vmem>>, vector<256x256xf32>
    %c0_38 = arith.constant 0 : index
    %c0_39 = arith.constant 0 : index
    %123 = vector.load %arg6[%c0_38, %c0_39] : memref<256x256xf32, #tpu.memory_space<vmem>>, vector<256x256xf32>
    %c0_40 = arith.constant 0 : index
    %c0_41 = arith.constant 0 : index
    %c0_42 = arith.constant 0 : index
    %124 = vector.load %arg2[%c0_40, %c0_41, %c0_42] : memref<1x2x256xf32, #tpu.memory_space<vmem>>, vector<1x2x256xf32>
    %125 = vector.shape_cast %124 : vector<1x2x256xf32> to vector<2x256xf32>
    %c0_43 = arith.constant 0 : index
    %c0_44 = arith.constant 0 : index
    %c0_45 = arith.constant 0 : index
    %126 = vector.load %arg3[%c0_43, %c0_44, %c0_45] : memref<1x1x256xf32, #tpu.memory_space<vmem>>, vector<1x1x256xf32>
    %127 = vector.shape_cast %126 : vector<1x1x256xf32> to vector<1x256xf32>
    %c0_46 = arith.constant 0 : index
    %c0_47 = arith.constant 0 : index
    %128 = memref.load %arg7[%c0_46, %c0_47] : memref<1x1xf32, #tpu.memory_space<smem>>
    %cst_48 = arith.constant dense<0.000000e+00> : vector<2x256xf32>
    %129 = tpu.matmul %121, %122, %cst_48 {dimension_numbers = #tpu.dot_dimension_numbers<[1], [0], [0], [1], [0, 0, 1, 1], [], []>} : vector<2x256xf32>, vector<256x256xf32>, vector<2x256xf32> -> vector<2x256xf32>
    %cst_49 = arith.constant dense<0.000000e+00> : vector<2x256xf32>
    %130 = tpu.matmul %121, %123, %cst_49 {dimension_numbers = #tpu.dot_dimension_numbers<[1], [0], [0], [1], [0, 0, 1, 1], [], []>} : vector<2x256xf32>, vector<256x256xf32>, vector<2x256xf32> -> vector<2x256xf32>
    %131 = vector.extract_strided_slice %129 {offsets = [0, 0], sizes = [1, 256], strides = [1, 1]} : vector<2x256xf32> to vector<1x256xf32>
    %132 = vector.extract_strided_slice %130 {offsets = [1, 0], sizes = [1, 256], strides = [1, 1]} : vector<2x256xf32> to vector<1x256xf32>
    %133 = arith.subf %131, %132 : vector<1x256xf32>
    %134 = vector.extract_strided_slice %130 {offsets = [0, 0], sizes = [1, 256], strides = [1, 1]} : vector<2x256xf32> to vector<1x256xf32>
    %135 = vector.extract_strided_slice %129 {offsets = [1, 0], sizes = [1, 256], strides = [1, 1]} : vector<2x256xf32> to vector<1x256xf32>
    %136 = arith.addf %134, %135 : vector<1x256xf32>
    %137 = vector.extract_strided_slice %125 {offsets = [0, 0], sizes = [1, 256], strides = [1, 1]} : vector<2x256xf32> to vector<1x256xf32>
    %138 = arith.mulf %127, %133 : vector<1x256xf32>
    %139 = arith.subf %137, %138 : vector<1x256xf32>
    %140 = vector.extract_strided_slice %125 {offsets = [1, 0], sizes = [1, 256], strides = [1, 1]} : vector<2x256xf32> to vector<1x256xf32>
    %141 = arith.mulf %127, %136 : vector<1x256xf32>
    %142 = arith.subf %140, %141 : vector<1x256xf32>
    %143 = tpu.concatenate %139, %142 in 0 : vector<1x256xf32>, vector<1x256xf32> -> vector<2x256xf32>
    %cst_50 = arith.constant dense<0.000000e+00> : vector<2x256xf32>
    %144 = tpu.matmul %143, %122, %cst_50 {dimension_numbers = #tpu.dot_dimension_numbers<[1], [0], [0], [1], [0, 0, 1, 1], [], []>} : vector<2x256xf32>, vector<256x256xf32>, vector<2x256xf32> -> vector<2x256xf32>
    %cst_51 = arith.constant dense<0.000000e+00> : vector<2x256xf32>
    %145 = tpu.matmul %143, %123, %cst_51 {dimension_numbers = #tpu.dot_dimension_numbers<[1], [0], [0], [1], [0, 0, 1, 1], [], []>} : vector<2x256xf32>, vector<256x256xf32>, vector<2x256xf32> -> vector<2x256xf32>
    %146 = vector.extract_strided_slice %144 {offsets = [0, 0], sizes = [1, 256], strides = [1, 1]} : vector<2x256xf32> to vector<1x256xf32>
    %147 = vector.extract_strided_slice %145 {offsets = [1, 0], sizes = [1, 256], strides = [1, 1]} : vector<2x256xf32> to vector<1x256xf32>
    %148 = arith.addf %146, %147 : vector<1x256xf32>
    %149 = vector.extract_strided_slice %144 {offsets = [1, 0], sizes = [1, 256], strides = [1, 1]} : vector<2x256xf32> to vector<1x256xf32>
    %150 = vector.extract_strided_slice %145 {offsets = [0, 0], sizes = [1, 256], strides = [1, 1]} : vector<2x256xf32> to vector<1x256xf32>
    %151 = arith.subf %149, %150 : vector<1x256xf32>
    %152 = tpu.concatenate %148, %151 in 0 : vector<1x256xf32>, vector<1x256xf32> -> vector<2x256xf32>
    %153 = vector.broadcast %128 : f32 to vector<2x256xf32>
    %154 = arith.mulf %153, %152 : vector<2x256xf32>
    %155 = arith.addf %121, %154 : vector<2x256xf32>
    %c0_52 = arith.constant 0 : index
    %c0_53 = arith.constant 0 : index
    %c0_54 = arith.constant 0 : index
    %156 = vector.load %arg14[%c0_52, %c0_53, %c0_54] : memref<1x2x256xf32, #tpu.memory_space<vmem>>, vector<1x2x256xf32>
    %157 = vector.shape_cast %156 : vector<1x2x256xf32> to vector<2x256xf32>
    %158 = vector.shape_cast %155 : vector<2x256xf32> to vector<1x2x256xf32>
    tpu.vector_store %arg14[%c0_52, %c0_53, %c0_54], %158 {strides = array<i32>} : memref<1x2x256xf32, #tpu.memory_space<vmem>>, vector<1x2x256xf32>,
    return
  }
  func.func @transform_0(%arg0: i32) -> (i32, i32, i32) {
    %c0_i32 = arith.constant 0 : i32
    %c0_i32_0 = arith.constant 0 : i32
    %c0_i32_1 = arith.constant 0 : i32
    return %arg0, %c0_i32, %c0_i32_0 : i32, i32, i32
  }
  func.func @transform_1(%arg0: i32) -> (i32, i32, i32) {
    %c0_i32 = arith.constant 0 : i32
    %c0_i32_0 = arith.constant 0 : i32
    %c0_i32_1 = arith.constant 0 : i32
    return %arg0, %c0_i32, %c0_i32_0 : i32, i32, i32
  }
  func.func @transform_2(%arg0: i32) -> (i32, i32, i32) {
    %c0_i32 = arith.constant 0 : i32
    %c0_i32_0 = arith.constant 0 : i32
    %c0_i32_1 = arith.constant 0 : i32
    return %arg0, %c0_i32, %c0_i32_0 : i32, i32, i32
  }
  func.func @transform_3(%arg0: i32) -> (i32, i32) {
    %c0_i32 = arith.constant 0 : i32
    %c0_i32_0 = arith.constant 0 : i32
    %c0_i32_1 = arith.constant 0 : i32
    return %c0_i32, %c0_i32_0 : i32, i32
  }
  func.func @transform_4(%arg0: i32) -> (i32, i32) {
    %c0_i32 = arith.constant 0 : i32
    %c0_i32_0 = arith.constant 0 : i32
    %c0_i32_1 = arith.constant 0 : i32
    return %c0_i32, %c0_i32_0 : i32, i32
  }
  func.func @transform_5(%arg0: i32) -> (i32, i32) {
    %c0_i32 = arith.constant 0 : i32
    %c0_i32_0 = arith.constant 0 : i32
    %c0_i32_1 = arith.constant 0 : i32
    return %c0_i32, %c0_i32_0 : i32, i32
  }
  func.func @transform_6(%arg0: i32) -> (i32, i32) {
    %c0_i32 = arith.constant 0 : i32
    %c0_i32_0 = arith.constant 0 : i32
    %c0_i32_1 = arith.constant 0 : i32
    return %c0_i32, %c0_i32_0 : i32, i32
  }
  func.func @transform_7(%arg0: i32) -> (i32, i32) {
    %c0_i32 = arith.constant 0 : i32
    %c0_i32_0 = arith.constant 0 : i32
    %c0_i32_1 = arith.constant 0 : i32
    return %c0_i32, %c0_i32_0 : i32, i32
  }
  func.func @transform_8(%arg0: i32) -> (i32, i32) {
    %c0_i32 = arith.constant 0 : i32
    %c0_i32_0 = arith.constant 0 : i32
    %c0_i32_1 = arith.constant 0 : i32
    return %c0_i32, %c0_i32_0 : i32, i32
  }
  func.func @transform_9(%arg0: i32) -> (i32, i32) {
    %c0_i32 = arith.constant 0 : i32
    %c0_i32_0 = arith.constant 0 : i32
    %c0_i32_1 = arith.constant 0 : i32
    return %c0_i32, %c0_i32_0 : i32, i32
  }
  func.func @transform_10(%arg0: i32) -> (i32, i32) {
    %c0_i32 = arith.constant 0 : i32
    %c0_i32_0 = arith.constant 0 : i32
    %c0_i32_1 = arith.constant 0 : i32
    return %c0_i32, %c0_i32_0 : i32, i32
  }
  func.func @transform_11(%arg0: i32) -> (i32, i32) {
    %c0_i32 = arith.constant 0 : i32
    %c0_i32_0 = arith.constant 0 : i32
    %c0_i32_1 = arith.constant 0 : i32
    return %c0_i32, %c0_i32_0 : i32, i32
  }
  func.func @transform_12(%arg0: i32) -> (i32, i32) {
    %c0_i32 = arith.constant 0 : i32
    %c0_i32_0 = arith.constant 0 : i32
    %c0_i32_1 = arith.constant 0 : i32
    return %c0_i32, %c0_i32_0 : i32, i32
  }
  func.func @transform_13(%arg0: i32) -> (i32, i32, i32) {
    %c0_i32 = arith.constant 0 : i32
    %c0_i32_0 = arith.constant 0 : i32
    %c0_i32_1 = arith.constant 0 : i32
    return %arg0, %c0_i32, %c0_i32_0 : i32, i32, i32
  }
}

</mosaic_0001>

<llo_original>
// kernel: mul.9
$region0: #{mul.9}
  #allocation0 [shape = 's32[1]{0}', space=sflag, size = 0x4, scoped, tag = 'scoped memory for mul.9']
  %s0 = inlined_call_operand.vmem [shape: f32[2,1,16,16], index: 0, kind: input, shape index: {}, may-alias: {0,1}]
  %s1 = inlined_call_operand.vmem [shape: f32[2,1,16,16], index: 1, kind: input, shape index: {}, may-alias: {0,1}]
  %s2 = inlined_call_operand.vmem [shape: f32[2,1,16,16], index: 2, kind: output, shape index: {}]
  %v3 = vld [vmem:[%s0] sm:$0xff]
  %v4 = vld [vmem:[%s1] sm:$0xff]
  %5 = xla_tuple %v3, %v4
  %6 = xla_tuple %5
  %v7 = vmul.f32 %v3, %v4
  %8 = xla_tuple %v7
  %9 = vst [vmem:[%s2] sm:$0xff] %v7
  %s10 = scalar_lea.vmem %s0, 16
  %v11 = vld [vmem:[%s10] sm:$0xff]
  %s12 = scalar_lea.vmem %s1, 16
  %v13 = vld [vmem:[%s12] sm:$0xff]
  %14 = xla_tuple %v11, %v13
  %15 = xla_tuple %14
  %v16 = vmul.f32 %v11, %v13
  %17 = xla_tuple %v16
  %s18 = scalar_lea.vmem %s2, 16
  %19 = vst [vmem:[%s18] sm:$0xff] %v16
  %s20 = scalar_lea.vmem %s0, 8
  %v21 = vld [vmem:[%s20] sm:$0xff]
  %s22 = scalar_lea.vmem %s1, 8
  %v23 = vld [vmem:[%s22] sm:$0xff]
  %24 = xla_tuple %v21, %v23
  %25 = xla_tuple %24
  %v26 = vmul.f32 %v21, %v23
  %27 = xla_tuple %v26
  %s28 = scalar_lea.vmem %s2, 8
  %29 = vst [vmem:[%s28] sm:$0xff] %v26
  %s30 = scalar_lea.vmem %s0, 24
  %v31 = vld [vmem:[%s30] sm:$0xff]
  %s32 = scalar_lea.vmem %s1, 24
  %v33 = vld [vmem:[%s32] sm:$0xff]
  %34 = xla_tuple %v31, %v33
  %35 = xla_tuple %34
  %v36 = vmul.f32 %v31, %v33
  %37 = xla_tuple %v36
  %s38 = scalar_lea.vmem %s2, 24
  %39 = vst [vmem:[%s38] sm:$0xff] %v36

// kernel: dccnn_forward.2
$region0: #{dccnn_forward.2}
  #allocation0 [shape = 'u32[]', space=smem, size = 0x4, offset = 0x4, fixed_abs, tag = 'smem constant byte address 0x4 - core index']
  #allocation1 [shape = 'u32[72,128]{1,0:T(1,128)}', space=vmem, size = 0x9000, scoped, tag = 'internal scratch']
  #allocation2 [shape = 'f32[1,1]{1,0:T(1,128)S(6)}', space=smem, size = 0x200, scoped, tag = 'scoped memory for dccnn_forward.2']
  %s0 = inlined_call_operand.vmem [shape: f32[2,2,256], index: 0, kind: input, shape index: {}]
  %s1 = inlined_call_operand.vmem [shape: f32[2,2,256], index: 1, kind: input, shape index: {}]
  %s2 = inlined_call_operand.vmem [shape: f32[2,1,256], index: 2, kind: input, shape index: {}]
  %s3 = inlined_call_operand.vmem [shape: f32[9,256], index: 3, kind: input, shape index: {}]
  %s4 = inlined_call_operand.hbm [shape: f32[256,256], index: 4, kind: input, shape index: {}]
  %s5 = inlined_call_operand.hbm [shape: f32[256,256], index: 5, kind: input, shape index: {}]
  %s6 = inlined_call_operand.<no memory space> [shape: f32[1,1], index: 6, kind: input, shape index: {}]
  %s7 = inlined_call_operand.vmem [shape: f32[32,18], index: 7, kind: input, shape index: {}]
  %s8 = inlined_call_operand.vmem [shape: f32[32,1], index: 8, kind: input, shape index: {}]
  %s9 = inlined_call_operand.vmem [shape: f32[32,288], index: 9, kind: input, shape index: {}]
  %s10 = inlined_call_operand.vmem [shape: f32[32,1], index: 10, kind: input, shape index: {}]
  %s11 = inlined_call_operand.vmem [shape: f32[2,288], index: 11, kind: input, shape index: {}]
  %s12 = inlined_call_operand.vmem [shape: f32[2,1], index: 12, kind: input, shape index: {}]
  %s13 = inlined_call_operand.vmem [shape: f32[2,2,256], index: 13, kind: output, shape index: {}]
  %s14 = sld [smem:[#allocation0]]
  $region93: #{dccnn_forward.2} parent=0
    _
  %s16 = ssub.s32 1, %s14
  %s17 = scalar_select 0, %s16, %s14
  %18 = sst [smem:[#allocation2]] %s6
  $region1: #{dccnn_forward.2} parent=0
    #allocation3 [shape = 'u8[262144]{0}', space=vmem, size = 0x40000, scoped, tag = 'input window, operand 4, single buffered']
    #allocation4 [shape = 's32[2]{0}', space=sflag, size = 0x8, scoped, tag = 'scoped memory for dccnn_forward.2']
    #allocation5 [shape = 'u8[262144]{0}', space=vmem, size = 0x40000, scoped, tag = 'input window, operand 5, single buffered']
    #allocation6 [shape = 's32[1]{0}', space=sflag, size = 0x4, scoped, tag = 'scoped memory for dccnn_forward.2']
    %19 = vsyncpa [#allocation4], 0
    %20 = vsyncpa [#allocation6], 0
    loop: start=0, step=1, limit=4
    $region2: #{dccnn_forward.2} parent=1 // loop_pre_header
      _
    $region3: #{dccnn_forward.2} parent=1 // loop_header
      %s22 = sphi 0, %s26
      %p23 = scmp.ge.s32.totalorder %s22, 4
      %s32 = sphi 0, %s34
      %s35 = sphi 0, %s32
      %s36 = sphi 0, %s35
      %s52 = sphi 0, %s36
      %s58 = sphi 0, %s60
      %s61 = sphi 0, %s58
      %s62 = sphi 0, %s61
      %s78 = sphi 0, %s62
      %s84 = sphi 0, %s86
      %s87 = sphi 0, %s84
      %s88 = sphi 0, %s87
      %s104 = sphi 0, %s88
      %s108 = sphi 0, %s108
      %s110 = sphi 0, %s108
      %s111 = sphi 0, %s110
      %s125 = sphi 0, %s111
      %s129 = sphi 0, %s129
      %s131 = sphi 0, %s129
      %s132 = sphi 0, %s131
      %s146 = sphi 0, %s132
      %s150 = sphi 0, %s150
      %s152 = sphi 0, %s150
      %s153 = sphi 0, %s152
      %s167 = sphi 0, %s153
      %s171 = sphi 0, %s171
      %s173 = sphi 0, %s171
      %s174 = sphi 0, %s173
      %s188 = sphi 0, %s174
      %s192 = sphi 0, %s192
      %s194 = sphi 0, %s192
      %s195 = sphi 0, %s194
      %s209 = sphi 0, %s195
      %s213 = sphi 0, %s213
      %s215 = sphi 0, %s213
      %s216 = sphi 0, %s215
      %s230 = sphi 0, %s216
      %s234 = sphi 0, %s234
      %s236 = sphi 0, %s234
      %s237 = sphi 0, %s236
      %s251 = sphi 0, %s237
      %s255 = sphi 0, %s255
      %s257 = sphi 0, %s255
      %s258 = sphi 0, %s257
      %s272 = sphi 0, %s258
      %s276 = sphi 0, %s276
      %s278 = sphi 0, %s276
      %s279 = sphi 0, %s278
      %s293 = sphi 0, %s279
      %s297 = sphi 0, %s297
      %s299 = sphi 0, %s297
      %s300 = sphi 0, %s299
      %s314 = sphi 0, %s300
      %s320 = sphi 0, %s322
      %s323 = sphi 0, %s320
      %s324 = sphi 0, %s323
      %s340 = sphi 0, %s324
    $region4: #{dccnn_forward.2} parent=1 // loop_header_branch
      %25 = sbr.rel (%p23) target = $region8
    $region5: #{dccnn_forward.2} parent=1 // loop_body
      %s27 = ssub.s32 %s22, 1
      %s28 = ssub.s32 %s22, 2
      %s29 = sadd.s32 %s22, 1
      %s30 = ssub.s32 %s22, %s29
      %p31 = scmp.eq.s32.totalorder %s30, 0
      %s33 = sadd.s32 %s32, 1
      %s34 = scalar_select %p31, %s32, %s33
      %p37 = pneg %p31
      %p38 = scmp.eq.s32.totalorder %s22, 1
      %p39 = por %p37, %p38
      %p40 = scmp.ne.s32.totalorder %s32, %s35
      %p41 = scmp.eq.s32.totalorder %s22, 0
      %p42 = por %p40, %p41
      %p43 = scmp.ne.s32.totalorder %s32, %s35
      %p44 = scmp.eq.s32.totalorder %s27, 1
      %p45 = por %p43, %p44
      %p46 = scmp.ne.s32.totalorder %s35, %s36
      %p47 = scmp.eq.s32.totalorder %s27, 0
      %p48 = por %p46, %p47
      %p49 = scmp.ne.s32.totalorder %s35, %s36
      %p50 = scmp.eq.s32.totalorder %s28, 1
      %p51 = por %p49, %p50
      %p53 = scmp.ne.s32.totalorder %s36, %s52
      %p54 = scmp.eq.s32.totalorder %s28, 0
      %p55 = por %p53, %p54
      %s56 = ssub.s32 %s22, %s29
      %p57 = scmp.eq.s32.totalorder %s56, 0
      %s59 = sadd.s32 %s58, 1
      %s60 = scalar_select %p57, %s58, %s59
      %p63 = pneg %p57
      %p64 = scmp.eq.s32.totalorder %s22, 1
      %p65 = por %p63, %p64
      %p66 = scmp.ne.s32.totalorder %s58, %s61
      %p67 = scmp.eq.s32.totalorder %s22, 0
      %p68 = por %p66, %p67
      %p69 = scmp.ne.s32.totalorder %s58, %s61
      %p70 = scmp.eq.s32.totalorder %s27, 1
      %p71 = por %p69, %p70
      %p72 = scmp.ne.s32.totalorder %s61, %s62
      %p73 = scmp.eq.s32.totalorder %s27, 0
      %p74 = por %p72, %p73
      %p75 = scmp.ne.s32.totalorder %s61, %s62
      %p76 = scmp.eq.s32.totalorder %s28, 1
      %p77 = por %p75, %p76
      %p79 = scmp.ne.s32.totalorder %s62, %s78
      %p80 = scmp.eq.s32.totalorder %s28, 0
      %p81 = por %p79, %p80
      %s82 = ssub.s32 %s22, %s29
      %p83 = scmp.eq.s32.totalorder %s82, 0
      %s85 = sadd.s32 %s84, 1
      %s86 = scalar_select %p83, %s84, %s85
      %p89 = pneg %p83
      %p90 = scmp.eq.s32.totalorder %s22, 1
      %p91 = por %p89, %p90
      %p92 = scmp.ne.s32.totalorder %s84, %s87
      %p93 = scmp.eq.s32.totalorder %s22, 0
      %p94 = por %p92, %p93
      %p95 = scmp.ne.s32.totalorder %s84, %s87
      %p96 = scmp.eq.s32.totalorder %s27, 1
      %p97 = por %p95, %p96
      %p98 = scmp.ne.s32.totalorder %s87, %s88
      %p99 = scmp.eq.s32.totalorder %s27, 0
      %p100 = por %p98, %p99
      %p101 = scmp.ne.s32.totalorder %s87, %s88
      %p102 = scmp.eq.s32.totalorder %s28, 1
      %p103 = por %p101, %p102
      %p105 = scmp.ne.s32.totalorder %s88, %s104
      %p106 = scmp.eq.s32.totalorder %s28, 0
      %p107 = por %p105, %p106
      %s109 = sadd.s32 %s108, 1
      %p112 = scmp.eq.s32.totalorder %s22, 1
      %p113 = scmp.ne.s32.totalorder %s108, %s110
      %p114 = scmp.eq.s32.totalorder %s22, 0
      %p115 = por %p113, %p114
      %p116 = scmp.ne.s32.totalorder %s108, %s110
      %p117 = scmp.eq.s32.totalorder %s27, 1
      %p118 = por %p116, %p117
      %p119 = scmp.ne.s32.totalorder %s110, %s111
      %p120 = scmp.eq.s32.totalorder %s27, 0
      %p121 = por %p119, %p120
      %p122 = scmp.ne.s32.totalorder %s110, %s111
      %p123 = scmp.eq.s32.totalorder %s28, 1
      %p124 = por %p122, %p123
      %p126 = scmp.ne.s32.totalorder %s111, %s125
      %p127 = scmp.eq.s32.totalorder %s28, 0
      %p128 = por %p126, %p127
      %s130 = sadd.s32 %s129, 1
      %p133 = scmp.eq.s32.totalorder %s22, 1
      %p134 = scmp.ne.s32.totalorder %s129, %s131
      %p135 = scmp.eq.s32.totalorder %s22, 0
      %p136 = por %p134, %p135
      %p137 = scmp.ne.s32.totalorder %s129, %s131
      %p138 = scmp.eq.s32.totalorder %s27, 1
      %p139 = por %p137, %p138
      %p140 = scmp.ne.s32.totalorder %s131, %s132
      %p141 = scmp.eq.s32.totalorder %s27, 0
      %p142 = por %p140, %p141
      %p143 = scmp.ne.s32.totalorder %s131, %s132
      %p144 = scmp.eq.s32.totalorder %s28, 1
      %p145 = por %p143, %p144
      %p147 = scmp.ne.s32.totalorder %s132, %s146
      %p148 = scmp.eq.s32.totalorder %s28, 0
      %p149 = por %p147, %p148
      %s151 = sadd.s32 %s150, 1
      %p154 = scmp.eq.s32.totalorder %s22, 1
      %p155 = scmp.ne.s32.totalorder %s150, %s152
      %p156 = scmp.eq.s32.totalorder %s22, 0
      %p157 = por %p155, %p156
      %p158 = scmp.ne.s32.totalorder %s150, %s152
      %p159 = scmp.eq.s32.totalorder %s27, 1
      %p160 = por %p158, %p159
      %p161 = scmp.ne.s32.totalorder %s152, %s153
      %p162 = scmp.eq.s32.totalorder %s27, 0
      %p163 = por %p161, %p162
      %p164 = scmp.ne.s32.totalorder %s152, %s153
      %p165 = scmp.eq.s32.totalorder %s28, 1
      %p166 = por %p164, %p165
      %p168 = scmp.ne.s32.totalorder %s153, %s167
      %p169 = scmp.eq.s32.totalorder %s28, 0
      %p170 = por %p168, %p169
      %s172 = sadd.s32 %s171, 1
      %p175 = scmp.eq.s32.totalorder %s22, 1
      %p176 = scmp.ne.s32.totalorder %s171, %s173
      %p177 = scmp.eq.s32.totalorder %s22, 0
      %p178 = por %p176, %p177
      %p179 = scmp.ne.s32.totalorder %s171, %s173
      %p180 = scmp.eq.s32.totalorder %s27, 1
      %p181 = por %p179, %p180
      %p182 = scmp.ne.s32.totalorder %s173, %s174
      %p183 = scmp.eq.s32.totalorder %s27, 0
      %p184 = por %p182, %p183
      %p185 = scmp.ne.s32.totalorder %s173, %s174
      %p186 = scmp.eq.s32.totalorder %s28, 1
      %p187 = por %p185, %p186
      %p189 = scmp.ne.s32.totalorder %s174, %s188
      %p190 = scmp.eq.s32.totalorder %s28, 0
      %p191 = por %p189, %p190
      %s193 = sadd.s32 %s192, 1
      %p196 = scmp.eq.s32.totalorder %s22, 1
      %p197 = scmp.ne.s32.totalorder %s192, %s194
      %p198 = scmp.eq.s32.totalorder %s22, 0
      %p199 = por %p197, %p198
      %p200 = scmp.ne.s32.totalorder %s192, %s194
      %p201 = scmp.eq.s32.totalorder %s27, 1
      %p202 = por %p200, %p201
      %p203 = scmp.ne.s32.totalorder %s194, %s195
      %p204 = scmp.eq.s32.totalorder %s27, 0
      %p205 = por %p203, %p204
      %p206 = scmp.ne.s32.totalorder %s194, %s195
      %p207 = scmp.eq.s32.totalorder %s28, 1
      %p208 = por %p206, %p207
      %p210 = scmp.ne.s32.totalorder %s195, %s209
      %p211 = scmp.eq.s32.totalorder %s28, 0
      %p212 = por %p210, %p211
      %s214 = sadd.s32 %s213, 1
      %p217 = scmp.eq.s32.totalorder %s22, 1
      %p218 = scmp.ne.s32.totalorder %s213, %s215
      %p219 = scmp.eq.s32.totalorder %s22, 0
      %p220 = por %p218, %p219
      %p221 = scmp.ne.s32.totalorder %s213, %s215
      %p222 = scmp.eq.s32.totalorder %s27, 1
      %p223 = por %p221, %p222
      %p224 = scmp.ne.s32.totalorder %s215, %s216
      %p225 = scmp.eq.s32.totalorder %s27, 0
      %p226 = por %p224, %p225
      %p227 = scmp.ne.s32.totalorder %s215, %s216
      %p228 = scmp.eq.s32.totalorder %s28, 1
      %p229 = por %p227, %p228
      %p231 = scmp.ne.s32.totalorder %s216, %s230
      %p232 = scmp.eq.s32.totalorder %s28, 0
      %p233 = por %p231, %p232
      %s235 = sadd.s32 %s234, 1
      %p238 = scmp.eq.s32.totalorder %s22, 1
      %p239 = scmp.ne.s32.totalorder %s234, %s236
      %p240 = scmp.eq.s32.totalorder %s22, 0
      %p241 = por %p239, %p240
      %p242 = scmp.ne.s32.totalorder %s234, %s236
      %p243 = scmp.eq.s32.totalorder %s27, 1
      %p244 = por %p242, %p243
      %p245 = scmp.ne.s32.totalorder %s236, %s237
      %p246 = scmp.eq.s32.totalorder %s27, 0
      %p247 = por %p245, %p246
      %p248 = scmp.ne.s32.totalorder %s236, %s237
      %p249 = scmp.eq.s32.totalorder %s28, 1
      %p250 = por %p248, %p249
      %p252 = scmp.ne.s32.totalorder %s237, %s251
      %p253 = scmp.eq.s32.totalorder %s28, 0
      %p254 = por %p252, %p253
      %s256 = sadd.s32 %s255, 1
      %p259 = scmp.eq.s32.totalorder %s22, 1
      %p260 = scmp.ne.s32.totalorder %s255, %s257
      %p261 = scmp.eq.s32.totalorder %s22, 0
      %p262 = por %p260, %p261
      %p263 = scmp.ne.s32.totalorder %s255, %s257
      %p264 = scmp.eq.s32.totalorder %s27, 1
      %p265 = por %p263, %p264
      %p266 = scmp.ne.s32.totalorder %s257, %s258
      %p267 = scmp.eq.s32.totalorder %s27, 0
      %p268 = por %p266, %p267
      %p269 = scmp.ne.s32.totalorder %s257, %s258
      %p270 = scmp.eq.s32.totalorder %s28, 1
      %p271 = por %p269, %p270
      %p273 = scmp.ne.s32.totalorder %s258, %s272
      %p274 = scmp.eq.s32.totalorder %s28, 0
      %p275 = por %p273, %p274
      %s277 = sadd.s32 %s276, 1
      %p280 = scmp.eq.s32.totalorder %s22, 1
      %p281 = scmp.ne.s32.totalorder %s276, %s278
      %p282 = scmp.eq.s32.totalorder %s22, 0
      %p283 = por %p281, %p282
      %p284 = scmp.ne.s32.totalorder %s276, %s278
      %p285 = scmp.eq.s32.totalorder %s27, 1
      %p286 = por %p284, %p285
      %p287 = scmp.ne.s32.totalorder %s278, %s279
      %p288 = scmp.eq.s32.totalorder %s27, 0
      %p289 = por %p287, %p288
      %p290 = scmp.ne.s32.totalorder %s278, %s279
      %p291 = scmp.eq.s32.totalorder %s28, 1
      %p292 = por %p290, %p291
      %p294 = scmp.ne.s32.totalorder %s279, %s293
      %p295 = scmp.eq.s32.totalorder %s28, 0
      %p296 = por %p294, %p295
      %s298 = sadd.s32 %s297, 1
      %p301 = scmp.eq.s32.totalorder %s22, 1
      %p302 = scmp.ne.s32.totalorder %s297, %s299
      %p303 = scmp.eq.s32.totalorder %s22, 0
      %p304 = por %p302, %p303
      %p305 = scmp.ne.s32.totalorder %s297, %s299
      %p306 = scmp.eq.s32.totalorder %s27, 1
      %p307 = por %p305, %p306
      %p308 = scmp.ne.s32.totalorder %s299, %s300
      %p309 = scmp.eq.s32.totalorder %s27, 0
      %p310 = por %p308, %p309
      %p311 = scmp.ne.s32.totalorder %s299, %s300
      %p312 = scmp.eq.s32.totalorder %s28, 1
      %p313 = por %p311, %p312
      %p315 = scmp.ne.s32.totalorder %s300, %s314
      %p316 = scmp.eq.s32.totalorder %s28, 0
      %p317 = por %p315, %p316
      %s318 = ssub.s32 %s22, %s29
      %p319 = scmp.eq.s32.totalorder %s318, 0
      %s321 = sadd.s32 %s320, 1
      %s322 = scalar_select %p319, %s320, %s321
      %p325 = pneg %p319
      %p326 = scmp.eq.s32.totalorder %s22, 1
      %p327 = por %p325, %p326
      %p328 = scmp.ne.s32.totalorder %s320, %s323
      %p329 = scmp.eq.s32.totalorder %s22, 0
      %p330 = por %p328, %p329
      %p331 = scmp.ne.s32.totalorder %s320, %s323
      %p332 = scmp.eq.s32.totalorder %s27, 1
      %p333 = por %p331, %p332
      %p334 = scmp.ne.s32.totalorder %s323, %s324
      %p335 = scmp.eq.s32.totalorder %s27, 0
      %p336 = por %p334, %p335
      %p337 = scmp.ne.s32.totalorder %s323, %s324
      %p338 = scmp.eq.s32.totalorder %s28, 1
      %p339 = por %p337, %p338
      %p341 = scmp.ne.s32.totalorder %s324, %s340
      %p342 = scmp.eq.s32.totalorder %s28, 0
      %p343 = por %p341, %p342
      %p344 = scmp.le.s32.totalorder 1, %s22
      %p345 = scmp.lt.s32.totalorder %s22, 3
      %p346 = pnand %p344, %p345
      %p347 = pneg %p346
      // Predicated region
      $region9: #{dccnn_forward.2} parent=5 // pred_check
        _
      $region10: #{dccnn_forward.2} parent=5 // pred_check_branch
        %349 = sbr.rel (%p346) target = $region12
      $region11: #{dccnn_forward.2} parent=5 // pred_region
        %s350 = ssub.s32 %s22, 1
        // Predicated region
        $region13: #{dccnn_forward.2} parent=11 // pred_check
          %p351 = pneg %p121
        $region14: #{dccnn_forward.2} parent=11 // pred_check_branch
          %353 = sbr.rel (%p351) target = $region16
        $region15: #{dccnn_forward.2} parent=11 // pred_region
          _
        $region16: #{dccnn_forward.2} parent=11 // pred_fallthru
          _
        // Predicated region
        $region17: #{dccnn_forward.2} parent=11 // pred_check
          %p354 = pneg %p142
        $region18: #{dccnn_forward.2} parent=11 // pred_check_branch
          %356 = sbr.rel (%p354) target = $region20
        $region19: #{dccnn_forward.2} parent=11 // pred_region
          %358 = vsyncadd [#allocation4], 0
          %s359 = sshll.u32 %s4, 4
          %s360 = int_to_ptr.hbm [resolvable:$true] %s359
          %s361 = sshll.u32 [#allocation3], 4
          %s362 = int_to_ptr.vmem [resolvable:$true] %s361
          %367 = dma.hbm_to_vmem [thread:$0]  %s360, 8192, %s362, [#allocation4], 256, 256, 16
        $region20: #{dccnn_forward.2} parent=11 // pred_fallthru
          _
        // Predicated region
        $region21: #{dccnn_forward.2} parent=11 // pred_check
          %p368 = pneg %p163
        $region22: #{dccnn_forward.2} parent=11 // pred_check_branch
          %370 = sbr.rel (%p368) target = $region24
        $region23: #{dccnn_forward.2} parent=11 // pred_region
          %372 = vsyncadd [#allocation6], 0
          %s373 = sshll.u32 %s5, 4
          %s374 = int_to_ptr.hbm [resolvable:$true] %s373
          %s375 = sshll.u32 [#allocation5], 4
          %s376 = int_to_ptr.vmem [resolvable:$true] %s375
          %381 = dma.hbm_to_vmem [thread:$0]  %s374, 8192, %s376, [#allocation6], 256, 256, 16
        $region24: #{dccnn_forward.2} parent=11 // pred_fallthru
          _
        // Predicated region
        $region25: #{dccnn_forward.2} parent=11 // pred_check
          %p382 = pneg %p184
        $region26: #{dccnn_forward.2} parent=11 // pred_check_branch
          %384 = sbr.rel (%p382) target = $region28
        $region27: #{dccnn_forward.2} parent=11 // pred_region
          _
        $region28: #{dccnn_forward.2} parent=11 // pred_fallthru
          _
        // Predicated region
        $region29: #{dccnn_forward.2} parent=11 // pred_check
          %p385 = pneg %p205
        $region30: #{dccnn_forward.2} parent=11 // pred_check_branch
          %387 = sbr.rel (%p385) target = $region32
        $region31: #{dccnn_forward.2} parent=11 // pred_region
          _
        $region32: #{dccnn_forward.2} parent=11 // pred_fallthru
          _
        // Predicated region
        $region33: #{dccnn_forward.2} parent=11 // pred_check
          %p388 = pneg %p226
        $region34: #{dccnn_forward.2} parent=11 // pred_check_branch
          %390 = sbr.rel (%p388) target = $region36
        $region35: #{dccnn_forward.2} parent=11 // pred_region
          _
        $region36: #{dccnn_forward.2} parent=11 // pred_fallthru
          _
        // Predicated region
        $region37: #{dccnn_forward.2} parent=11 // pred_check
          %p391 = pneg %p247
        $region38: #{dccnn_forward.2} parent=11 // pred_check_branch
          %393 = sbr.rel (%p391) target = $region40
        $region39: #{dccnn_forward.2} parent=11 // pred_region
          _
        $region40: #{dccnn_forward.2} parent=11 // pred_fallthru
          _
        // Predicated region
        $region41: #{dccnn_forward.2} parent=11 // pred_check
          %p394 = pneg %p268
        $region42: #{dccnn_forward.2} parent=11 // pred_check_branch
          %396 = sbr.rel (%p394) target = $region44
        $region43: #{dccnn_forward.2} parent=11 // pred_region
          _
        $region44: #{dccnn_forward.2} parent=11 // pred_fallthru
          _
        // Predicated region
        $region45: #{dccnn_forward.2} parent=11 // pred_check
          %p397 = pneg %p289
        $region46: #{dccnn_forward.2} parent=11 // pred_check_branch
          %399 = sbr.rel (%p397) target = $region48
        $region47: #{dccnn_forward.2} parent=11 // pred_region
          _
        $region48: #{dccnn_forward.2} parent=11 // pred_fallthru
          _
        // Predicated region
        $region49: #{dccnn_forward.2} parent=11 // pred_check
          %p400 = pneg %p310
        $region50: #{dccnn_forward.2} parent=11 // pred_check_branch
          %402 = sbr.rel (%p400) target = $region52
        $region51: #{dccnn_forward.2} parent=11 // pred_region
          _
        $region52: #{dccnn_forward.2} parent=11 // pred_fallthru
          _
      $region12: #{dccnn_forward.2} parent=5 // pred_fallthru
        _
      %p403 = scmp.lt.s32.totalorder %s22, 2
      // Predicated region
      $region53: #{dccnn_forward.2} parent=5 // pred_check
        %p404 = pneg %p403
      $region54: #{dccnn_forward.2} parent=5 // pred_check_branch
        %406 = sbr.rel (%p404) target = $region56
      $region55: #{dccnn_forward.2} parent=5 // pred_region
        // Predicated region
        $region57: #{dccnn_forward.2} parent=55 // pred_check
          %p407 = pneg %p42
        $region58: #{dccnn_forward.2} parent=55 // pred_check_branch
          %409 = sbr.rel (%p407) target = $region60
        $region59: #{dccnn_forward.2} parent=55 // pred_region
          %p410 = scmp.lt.s32.totalorder %s22, 1
          %s411 = scalar_select %p410, %s22, 1
          %s412 = smul.addr %s411, 2
          %s413 = smul.addr %s412, 2
          %s414 = scalar_lea.vmem %s0, %s413
        $region60: #{dccnn_forward.2} parent=55 // pred_fallthru
          _
        // Predicated region
        $region61: #{dccnn_forward.2} parent=55 // pred_check
          %p415 = pneg %p68
        $region62: #{dccnn_forward.2} parent=55 // pred_check_branch
          %417 = sbr.rel (%p415) target = $region64
        $region63: #{dccnn_forward.2} parent=55 // pred_region
          %p418 = scmp.lt.s32.totalorder %s22, 1
          %s419 = scalar_select %p418, %s22, 1
          %s420 = smul.addr %s419, 2
          %s421 = smul.addr %s420, 2
          %s422 = scalar_lea.vmem %s1, %s421
        $region64: #{dccnn_forward.2} parent=55 // pred_fallthru
          _
        // Predicated region
        $region65: #{dccnn_forward.2} parent=55 // pred_check
          %p423 = pneg %p94
        $region66: #{dccnn_forward.2} parent=55 // pred_check_branch
          %425 = sbr.rel (%p423) target = $region68
        $region67: #{dccnn_forward.2} parent=55 // pred_region
          %p426 = scmp.lt.s32.totalorder %s22, 1
          %s427 = scalar_select %p426, %s22, 1
          %s428 = smul.addr %s427, 2
          %s429 = scalar_lea.vmem %s2, %s428
        $region68: #{dccnn_forward.2} parent=55 // pred_fallthru
          _
      $region56: #{dccnn_forward.2} parent=5 // pred_fallthru
        _
      %p430 = scmp.le.s32.totalorder 1, %s22
      %p431 = scmp.lt.s32.totalorder %s22, 3
      %p432 = pnand %p430, %p431
      %p433 = pneg %p432
      // Predicated region
      $region69: #{dccnn_forward.2} parent=5 // pred_check
        _
      $region70: #{dccnn_forward.2} parent=5 // pred_check_branch
        %435 = sbr.rel (%p432) target = $region72
      $region71: #{dccnn_forward.2} parent=5 // pred_region
        %s436 = ssub.s32 %s22, 1
        // Predicated region
        $region73: #{dccnn_forward.2} parent=71 // pred_check
          %p437 = pneg %p142
        $region74: #{dccnn_forward.2} parent=71 // pred_check_branch
          %439 = sbr.rel (%p437) target = $region76
        $region75: #{dccnn_forward.2} parent=71 // pred_region
          %441 = dma.done [#allocation4], 8192
        $region76: #{dccnn_forward.2} parent=71 // pred_fallthru
          _
        // Predicated region
        $region77: #{dccnn_forward.2} parent=71 // pred_check
          %p442 = pneg %p163
        $region78: #{dccnn_forward.2} parent=71 // pred_check_branch
          %444 = sbr.rel (%p442) target = $region80
        $region79: #{dccnn_forward.2} parent=71 // pred_region
          %446 = dma.done [#allocation6], 8192
        $region80: #{dccnn_forward.2} parent=71 // pred_fallthru
          _
        %p447 = scmp.lt.s32.totalorder %s27, 1
        %s448 = scalar_select %p447, %s27, 1
        %s449 = smul.addr %s448, 2
        %s450 = smul.addr %s449, 2
        %s451 = scalar_lea.vmem %s0, %s450
        %p452 = pneg %p48
        %p453 = pneg %p45
        %p454 = scmp.lt.s32.totalorder %s27, 1
        %s455 = scalar_select %p454, %s27, 1
        %s456 = smul.addr %s455, 2
        %s457 = smul.addr %s456, 2
        %s458 = scalar_lea.vmem %s1, %s457
        %p459 = pneg %p74
        %p460 = pneg %p71
        %p461 = scmp.lt.s32.totalorder %s27, 1
        %s462 = scalar_select %p461, %s27, 1
        %s463 = smul.addr %s462, 2
        %s464 = scalar_lea.vmem %s2, %s463
        %p465 = pneg %p100
        %p466 = pneg %p97
        %p467 = pneg %p121
        %p468 = pneg %p118
        %p469 = pneg %p142
        %p470 = pneg %p139
        %p471 = pneg %p163
        %p472 = pneg %p160
        %p473 = pneg %p184
        %p474 = pneg %p181
        %p475 = pneg %p205
        %p476 = pneg %p202
        %p477 = pneg %p226
        %p478 = pneg %p223
        %p479 = pneg %p247
        %p480 = pneg %p244
        %p481 = pneg %p268
        %p482 = pneg %p265
        %p483 = pneg %p289
        %p484 = pneg %p286
        %p485 = pneg %p310
        %p486 = pneg %p307
        %p487 = pneg %p336
        %p488 = pneg %p333
        %p489 = scmp.lt.s32.totalorder %s27, 1
        %s490 = scalar_select %p489, %s27, 1
        %s491 = smul.addr %s490, 2
        %s492 = smul.addr %s491, 2
        %s493 = scalar_lea.vmem %s13, %s492
        %p494 = scmp.lt.s32.totalorder %s27, 1
        %s495 = scalar_select %p494, %s27, 1
        %s496 = smul.addr %s495, 2
        %s497 = smul.addr %s496, 2
        %s498 = scalar_lea.vmem %s0, %s497
        %p499 = scmp.lt.s32.totalorder %s27, 1
        %s500 = scalar_select %p499, %s27, 1
        %s501 = smul.addr %s500, 2
        %s502 = smul.addr %s501, 2
        %s503 = scalar_lea.vmem %s1, %s502
        %p504 = scmp.lt.s32.totalorder %s27, 1
        %s505 = scalar_select %p504, %s27, 1
        %s506 = smul.addr %s505, 2
        %s507 = scalar_lea.vmem %s2, %s506
        %p508 = scmp.lt.s32.totalorder %s27, 1
        %s509 = scalar_select %p508, %s27, 1
        %s510 = smul.addr %s509, 2
        %s511 = smul.addr %s510, 2
        %s512 = scalar_lea.vmem %s13, %s511
        %v513 = vld [vmem:[%s498] sm:$0xf]
        %v514 = vld [vmem:[%s3] sm:$0xff]
        %v515 = vld [vmem:[%s3 + $0x8] sm:$0xff]
        %v516 = vld [vmem:[%s3 + $0x10] sm:$0x1]
        %v517 = vld [vmem:[%s3 + $0x18] sm:$0x1]
        %v518 = vld [vmem:[%s7] sm:$0xff]
        %v519 = vld [vmem:[%s7 + $0x8] sm:$0xff]
        %v520 = vld [vmem:[%s7 + $0x10] sm:$0xff]
        %v521 = vld [vmem:[%s7 + $0x18] sm:$0xff]
        %v522 = vld [vmem:[%s8] sm:$0xff]
        %v523 = vld [vmem:[%s8 + $0x8] sm:$0xff]
        %v524 = vld [vmem:[%s8 + $0x10] sm:$0xff]
        %v525 = vld [vmem:[%s8 + $0x18] sm:$0xff]
        %527 = vst [vmem:[#allocation1] ss:$4 sm:$0xff] %v513
        %v528 = vld.sshfl [vmem:[#allocation1] sm:$0xff pattern:$0x73625140]
        %v529 = vld.sshfl [vmem:[#allocation1 + $0x8] sm:$0xff pattern:$0x73625140]
        %532 = vrot.lane.b32.xlu0 %v528, 17
        %v533 = vpop.permute.xlu0 %532
        %534 = vrot.lane.b32.xlu0 %v529, 17
        %v535 = vpop.permute.xlu0 %534
        %v536 = vlaneseq
        %v537 = vand.u32 %v536, 127
        %vm538 = vcmp.lt.s32.totalorder %v537, 17
        %v539 = vsel %vm538, %v533, %v535
        %v540 = vsel %vm538, %v535, %v533
        %v541 = vperm.slane %v514, 0
        %v542 = vperm.slane %v515, 0
        %v543 = vmul.f32 %v540, %v541
        %v544 = vmul.f32 %v539, %v542
        %545 = vst [vmem:[#allocation1] ss:$4 sm:$0xff] %v513
        %v546 = vld.sshfl [vmem:[#allocation1] sm:$0xff pattern:$0x73625140]
        %v547 = vld.sshfl [vmem:[#allocation1 + $0x8] sm:$0xff pattern:$0x73625140]
        %550 = vrot.lane.b32.xlu0 %v546, 16
        %v551 = vpop.permute.xlu0 %550
        %552 = vrot.lane.b32.xlu0 %v547, 16
        %v553 = vpop.permute.xlu0 %552
        %vm554 = vcmp.lt.s32.totalorder %v537, 16
        %v555 = vsel %vm554, %v551, %v553
        %v556 = vsel %vm554, %v553, %v551
        %v557 = vperm.slane %v514, 1
        %v558 = vperm.slane %v515, 1
        %v559 = vmul.f32 %v556, %v557
        %v560 = vmul.f32 %v555, %v558
        %561 = vst [vmem:[#allocation1] ss:$4 sm:$0xff] %v513
        %v562 = vld.sshfl [vmem:[#allocation1] sm:$0xff pattern:$0x73625140]
        %v563 = vld.sshfl [vmem:[#allocation1 + $0x8] sm:$0xff pattern:$0x73625140]
        %566 = vrot.lane.b32.xlu0 %v562, 15
        %v567 = vpop.permute.xlu0 %566
        %568 = vrot.lane.b32.xlu0 %v563, 15
        %v569 = vpop.permute.xlu0 %568
        %vm570 = vcmp.lt.s32.totalorder %v537, 15
        %v571 = vsel %vm570, %v567, %v569
        %v572 = vsel %vm570, %v569, %v567
        %v573 = vperm.slane %v514, 2
        %v574 = vperm.slane %v515, 2
        %v575 = vmul.f32 %v572, %v573
        %v576 = vmul.f32 %v571, %v574
        %577 = vst [vmem:[#allocation1] ss:$4 sm:$0xff] %v513
        %v578 = vld.sshfl [vmem:[#allocation1] sm:$0xff pattern:$0x73625140]
        %v579 = vld.sshfl [vmem:[#allocation1 + $0x8] sm:$0xff pattern:$0x73625140]
        %582 = vrot.lane.b32.xlu0 %v578, 1
        %v583 = vpop.permute.xlu0 %582
        %584 = vrot.lane.b32.xlu0 %v579, 1
        %v585 = vpop.permute.xlu0 %584
        %vm586 = vcmp.lt.s32.totalorder %v537, 1
        %v587 = vsel %vm586, %v583, %v585
        %v588 = vsel %vm586, %v585, %v583
        %v589 = vperm.slane %v514, 3
        %v590 = vperm.slane %v515, 3
        %v591 = vmul.f32 %v588, %v589
        %v592 = vmul.f32 %v587, %v590
        %593 = vst [vmem:[#allocation1] ss:$4 sm:$0xff] %v513
        %v594 = vld.sshfl [vmem:[#allocation1] sm:$0xff pattern:$0x73625140]
        %v595 = vld.sshfl [vmem:[#allocation1 + $0x8] sm:$0xff pattern:$0x73625140]
        %598 = vrot.lane.b32.xlu0 %v594, 127
        %v599 = vpop.permute.xlu0 %598
        %600 = vrot.lane.b32.xlu0 %v595, 127
        %v601 = vpop.permute.xlu0 %600
        %vm602 = vcmp.lt.s32.totalorder %v537, 127
        %v603 = vsel %vm602, %v599, %v601
        %v604 = vsel %vm602, %v601, %v599
        %v605 = vperm.slane %v514, 5
        %v606 = vperm.slane %v515, 5
        %v607 = vmul.f32 %v603, %v605
        %v608 = vmul.f32 %v604, %v606
        %609 = vst [vmem:[#allocation1] ss:$4 sm:$0xff] %v513
        %v610 = vld.sshfl [vmem:[#allocation1] sm:$0xff pattern:$0x73625140]
        %v611 = vld.sshfl [vmem:[#allocation1 + $0x8] sm:$0xff pattern:$0x73625140]
        %614 = vrot.lane.b32.xlu0 %v610, 113
        %v615 = vpop.permute.xlu0 %614
        %616 = vrot.lane.b32.xlu0 %v611, 113
        %v617 = vpop.permute.xlu0 %616
        %vm618 = vcmp.lt.s32.totalorder %v537, 113
        %v619 = vsel %vm618, %v615, %v617
        %v620 = vsel %vm618, %v617, %v615
        %v621 = vperm.slane %v514, 6
        %v622 = vperm.slane %v515, 6
        %v623 = vmul.f32 %v619, %v621
        %v624 = vmul.f32 %v620, %v622
        %625 = vst [vmem:[#allocation1] ss:$4 sm:$0xff] %v513
        %v626 = vld.sshfl [vmem:[#allocation1] sm:$0xff pattern:$0x73625140]
        %v627 = vld.sshfl [vmem:[#allocation1 + $0x8] sm:$0xff pattern:$0x73625140]
        %630 = vrot.lane.b32.xlu0 %v626, 112
        %v631 = vpop.permute.xlu0 %630
        %632 = vrot.lane.b32.xlu0 %v627, 112
        %v633 = vpop.permute.xlu0 %632
        %vm634 = vcmp.lt.s32.totalorder %v537, 112
        %v635 = vsel %vm634, %v631, %v633
        %v636 = vsel %vm634, %v633, %v631
        %v637 = vperm.slane %v514, 7
        %v638 = vperm.slane %v515, 7
        %v639 = vmul.f32 %v635, %v637
        %v640 = vmul.f32 %v636, %v638
        %641 = vst [vmem:[#allocation1] ss:$4 sm:$0xff] %v513
        %v642 = vld.sshfl [vmem:[#allocation1] sm:$0xff pattern:$0x73625140]
        %v643 = vld.sshfl [vmem:[#allocation1 + $0x8] sm:$0xff pattern:$0x73625140]
        %646 = vrot.lane.b32.xlu0 %v642, 111
        %v647 = vpop.permute.xlu0 %646
        %648 = vrot.lane.b32.xlu0 %v643, 111
        %v649 = vpop.permute.xlu0 %648
        %vm650 = vcmp.lt.s32.totalorder %v537, 111
        %v651 = vsel %vm650, %v647, %v649
        %v652 = vsel %vm650, %v649, %v647
        %v653 = vperm.slane %v516, 0
        %v654 = vperm.slane %v517, 0
        %v655 = vmul.f32 %v651, %v653
        %v656 = vmul.f32 %v652, %v654
        %v659 = vrot.slane %v559, 6
        %v660 = vrot.slane %v560, 6
        %v665 = vrot.slane %v575, 4
        %v666 = vrot.slane %v576, 4
        %v671 = vrot.slane %v591, 2
        %v672 = vrot.slane %v592, 2
        %675 = vst [vmem:[#allocation1] ss:$4 sm:$0xff] %v513
        %v676 = vld.sshfl [vmem:[#allocation1] sm:$0xff pattern:$0x73625140]
        %v677 = vld.sshfl [vmem:[#allocation1 + $0x8] sm:$0xff pattern:$0x73625140]
        %v682 = vrot.slane %v607, 6
        %v683 = vrot.slane %v608, 6
        %v688 = vrot.slane %v623, 4
        %v689 = vrot.slane %v624, 4
        %v694 = vrot.slane %v639, 2
        %v695 = vrot.slane %v640, 2
        %vm698 = vcmask 1041408
        %v699 = vsel %vm698, %v543, %v659
        %v700 = vsel %vm698, %v544, %v660
        %vm701 = vcmask 1043456
        %v702 = vsel %vm701, %v699, %v665
        %v703 = vsel %vm701, %v700, %v666
        %vm704 = vcmask 1045504
        %v705 = vsel %vm704, %v702, %v671
        %v706 = vsel %vm704, %v703, %v672
        %v707 = vsel %vm698, %v676, %v682
        %v708 = vsel %vm698, %v677, %v683
        %v709 = vsel %vm701, %v707, %v688
        %v710 = vsel %vm701, %v708, %v689
        %v711 = vsel %vm704, %v709, %v694
        %v712 = vsel %vm704, %v710, %v695
        %714 = vset.pattern.permute.xlu0 0
        %715 = vperm.xlu0 %714, %v522
        %v716 = vpop.permute.xlu0 %715
        %719 = vset.pattern.permute.xlu0 0
        %720 = vperm.xlu0 %719, %v523
        %v721 = vpop.permute.xlu0 %720
        %724 = vset.pattern.permute.xlu0 0
        %725 = vperm.xlu0 %724, %v524
        %v726 = vpop.permute.xlu0 %725
        %729 = vset.pattern.permute.xlu0 0
        %730 = vperm.xlu0 %729, %v525
        %v731 = vpop.permute.xlu0 %730
        %vm733 = vcmask 146432
        %v735 = vsel %vm733, %v518, 0
        %v738 = vsel %vm733, %v519, 0
        %v741 = vsel %vm733, %v520, 0
        %v744 = vsel %vm733, %v521, 0
        %v747 = vsel %vm698, %v655, 0
        %v750 = vsel %vm698, %v656, 0
        %752 = vmatpush.msra.mxu0 0.0
        %753 = vmatpush.msra.mxu0 0.0
        %754 = vmatpush.msra.mxu0 0.0
        %755 = vmatpush.msra.mxu0 0.0
        %756 = vmatpush.msra.mxu0 0.0
        %757 = vmatpush.msra.mxu0 0.0
        %758 = vmatpush.msra.mxu0 0.0
        %759 = vmatpush.msra.mxu0 0.0
        %760 = vmatpush.msra.mxu0 0.0
        %761 = vmatpush.msra.mxu0 0.0
        %762 = vmatpush.msra.mxu0 0.0
        %763 = vmatpush.msra.mxu0 0.0
        %764 = vmatpush.msra.mxu0 0.0
        %765 = vmatpush.msra.mxu0 %v747
        %766 = vmatpush.msra.mxu0 %v711
        %767 = vmatpush.msra.mxu0 %v705
        %768 = vmatmul.f32.gmra.mxu0 %v735
        %v769 = vpop.f32.mrf.mxu0
        %v770 = vadd.f32 %v716, %v769
        %771 = vmatmul.f32.gmra.mxu0 %v738
        %v772 = vpop.f32.mrf.mxu0
        %v773 = vadd.f32 %v721, %v772
        %774 = vmatmul.f32.gmra.mxu0 %v741
        %v775 = vpop.f32.mrf.mxu0
        %v776 = vadd.f32 %v726, %v775
        %777 = vmatmul.f32.gmra.mxu0 %v744
        %v778 = vpop.f32.mrf.mxu0
        %v779 = vadd.f32 %v731, %v778
        %780 = vdwg.mxu0
        %781 = vmatpush.msra.mxu0 0.0
        %782 = vmatpush.msra.mxu0 0.0
        %783 = vmatpush.msra.mxu0 0.0
        %784 = vmatpush.msra.mxu0 0.0
        %785 = vmatpush.msra.mxu0 0.0
        %786 = vmatpush.msra.mxu0 0.0
        %787 = vmatpush.msra.mxu0 0.0
        %788 = vmatpush.msra.mxu0 0.0
        %789 = vmatpush.msra.mxu0 0.0
        %790 = vmatpush.msra.mxu0 0.0
        %791 = vmatpush.msra.mxu0 0.0
        %792 = vmatpush.msra.mxu0 0.0
        %793 = vmatpush.msra.mxu0 0.0
        %794 = vmatpush.msra.mxu0 %v750
        %795 = vmatpush.msra.mxu0 %v712
        %796 = vmatpush.msra.mxu0 %v706
        %797 = vmatmul.f32.gmra.mxu0 %v735
        %v798 = vpop.f32.mrf.mxu0
        %v799 = vadd.f32 %v716, %v798
        %800 = vmatmul.f32.gmra.mxu0 %v738
        %v801 = vpop.f32.mrf.mxu0
        %v802 = vadd.f32 %v721, %v801
        %803 = vmatmul.f32.gmra.mxu0 %v741
        %v804 = vpop.f32.mrf.mxu0
        %v805 = vadd.f32 %v726, %v804
        %806 = vmatmul.f32.gmra.mxu0 %v744
        %v807 = vpop.f32.mrf.mxu0
        %v808 = vadd.f32 %v731, %v807
        %809 = vdwg.mxu0
        %v810 = vmax.f32 %v770, 0.0
        %v811 = vmax.f32 %v799, 0.0
        %v812 = vmax.f32 %v773, 0.0
        %v813 = vmax.f32 %v802, 0.0
        %v814 = vmax.f32 %v776, 0.0
        %v815 = vmax.f32 %v805, 0.0
        %v816 = vmax.f32 %v779, 0.0
        %v817 = vmax.f32 %v808, 0.0
        %v818 = vld [vmem:[%s9] sm:$0xff]
        %v819 = vld [vmem:[%s9 + $0x8] sm:$0xff]
        %v820 = vld [vmem:[%s9 + $0x10] sm:$0xff]
        %v821 = vld [vmem:[%s9 + $0x18] sm:$0xff]
        %v822 = vld [vmem:[%s9 + $0x20] sm:$0xff]
        %v823 = vld [vmem:[%s9 + $0x28] sm:$0xff]
        %v824 = vld [vmem:[%s9 + $0x30] sm:$0xff]
        %v825 = vld [vmem:[%s9 + $0x38] sm:$0xff]
        %v826 = vld [vmem:[%s9 + $0x40] sm:$0xff]
        %v827 = vld [vmem:[%s9 + $0x48] sm:$0xff]
        %v828 = vld [vmem:[%s9 + $0x50] sm:$0xff]
        %v829 = vld [vmem:[%s9 + $0x58] sm:$0xff]
        %v830 = vld [vmem:[%s10] sm:$0xff]
        %v831 = vld [vmem:[%s10 + $0x8] sm:$0xff]
        %v832 = vld [vmem:[%s10 + $0x10] sm:$0xff]
        %v833 = vld [vmem:[%s10 + $0x18] sm:$0xff]
        %834 = vrot.lane.b32.xlu0 %v810, 17
        %v835 = vpop.permute.xlu0 %834
        %836 = vrot.lane.b32.xlu0 %v812, 17
        %v837 = vpop.permute.xlu0 %836
        %838 = vrot.lane.b32.xlu0 %v814, 17
        %v839 = vpop.permute.xlu0 %838
        %840 = vrot.lane.b32.xlu0 %v816, 17
        %v841 = vpop.permute.xlu0 %840
        %842 = vrot.lane.b32.xlu0 %v811, 17
        %v843 = vpop.permute.xlu0 %842
        %844 = vrot.lane.b32.xlu0 %v813, 17
        %v845 = vpop.permute.xlu0 %844
        %846 = vrot.lane.b32.xlu0 %v815, 17
        %v847 = vpop.permute.xlu0 %846
        %848 = vrot.lane.b32.xlu0 %v817, 17
        %v849 = vpop.permute.xlu0 %848
        %v850 = vsel %vm538, %v835, %v843
        %v851 = vsel %vm538, %v837, %v845
        %v852 = vsel %vm538, %v839, %v847
        %v853 = vsel %vm538, %v841, %v849
        %v854 = vsel %vm538, %v843, %v835
        %v855 = vsel %vm538, %v845, %v837
        %v856 = vsel %vm538, %v847, %v839
        %v857 = vsel %vm538, %v849, %v841
        %v858 = vmul.f32 %v854, %v541
        %v859 = vmul.f32 %v850, %v542
        %v860 = vmul.f32 %v855, %v541
        %v861 = vmul.f32 %v851, %v542
        %v862 = vmul.f32 %v856, %v541
        %v863 = vmul.f32 %v852, %v542
        %v864 = vmul.f32 %v857, %v541
        %v865 = vmul.f32 %v853, %v542
        %866 = vrot.lane.b32.xlu0 %v810, 16
        %v867 = vpop.permute.xlu0 %866
        %868 = vrot.lane.b32.xlu0 %v812, 16
        %v869 = vpop.permute.xlu0 %868
        %870 = vrot.lane.b32.xlu0 %v814, 16
        %v871 = vpop.permute.xlu0 %870
        %872 = vrot.lane.b32.xlu0 %v816, 16
        %v873 = vpop.permute.xlu0 %872
        %874 = vrot.lane.b32.xlu0 %v811, 16
        %v875 = vpop.permute.xlu0 %874
        %876 = vrot.lane.b32.xlu0 %v813, 16
        %v877 = vpop.permute.xlu0 %876
        %878 = vrot.lane.b32.xlu0 %v815, 16
        %v879 = vpop.permute.xlu0 %878
        %880 = vrot.lane.b32.xlu0 %v817, 16
        %v881 = vpop.permute.xlu0 %880
        %v882 = vsel %vm554, %v867, %v875
        %v883 = vsel %vm554, %v869, %v877
        %v884 = vsel %vm554, %v871, %v879
        %v885 = vsel %vm554, %v873, %v881
        %v886 = vsel %vm554, %v875, %v867
        %v887 = vsel %vm554, %v877, %v869
        %v888 = vsel %vm554, %v879, %v871
        %v889 = vsel %vm554, %v881, %v873
        %v890 = vmul.f32 %v886, %v557
        %v891 = vmul.f32 %v882, %v558
        %v892 = vmul.f32 %v887, %v557
        %v893 = vmul.f32 %v883, %v558
        %v894 = vmul.f32 %v888, %v557
        %v895 = vmul.f32 %v884, %v558
        %v896 = vmul.f32 %v889, %v557
        %v897 = vmul.f32 %v885, %v558
        %898 = vrot.lane.b32.xlu0 %v810, 15
        %v899 = vpop.permute.xlu0 %898
        %900 = vrot.lane.b32.xlu0 %v812, 15
        %v901 = vpop.permute.xlu0 %900
        %902 = vrot.lane.b32.xlu0 %v814, 15
        %v903 = vpop.permute.xlu0 %902
        %904 = vrot.lane.b32.xlu0 %v816, 15
        %v905 = vpop.permute.xlu0 %904
        %906 = vrot.lane.b32.xlu0 %v811, 15
        %v907 = vpop.permute.xlu0 %906
        %908 = vrot.lane.b32.xlu0 %v813, 15
        %v909 = vpop.permute.xlu0 %908
        %910 = vrot.lane.b32.xlu0 %v815, 15
        %v911 = vpop.permute.xlu0 %910
        %912 = vrot.lane.b32.xlu0 %v817, 15
        %v913 = vpop.permute.xlu0 %912
        %v914 = vsel %vm570, %v899, %v907
        %v915 = vsel %vm570, %v901, %v909
        %v916 = vsel %vm570, %v903, %v911
        %v917 = vsel %vm570, %v905, %v913
        %v918 = vsel %vm570, %v907, %v899
        %v919 = vsel %vm570, %v909, %v901
        %v920 = vsel %vm570, %v911, %v903
        %v921 = vsel %vm570, %v913, %v905
        %v922 = vmul.f32 %v918, %v573
        %v923 = vmul.f32 %v914, %v574
        %v924 = vmul.f32 %v919, %v573
        %v925 = vmul.f32 %v915, %v574
        %v926 = vmul.f32 %v920, %v573
        %v927 = vmul.f32 %v916, %v574
        %v928 = vmul.f32 %v921, %v573
        %v929 = vmul.f32 %v917, %v574
        %930 = vrot.lane.b32.xlu0 %v810, 1
        %v931 = vpop.permute.xlu0 %930
        %932 = vrot.lane.b32.xlu0 %v812, 1
        %v933 = vpop.permute.xlu0 %932
        %934 = vrot.lane.b32.xlu0 %v814, 1
        %v935 = vpop.permute.xlu0 %934
        %936 = vrot.lane.b32.xlu0 %v816, 1
        %v937 = vpop.permute.xlu0 %936
        %938 = vrot.lane.b32.xlu0 %v811, 1
        %v939 = vpop.permute.xlu0 %938
        %940 = vrot.lane.b32.xlu0 %v813, 1
        %v941 = vpop.permute.xlu0 %940
        %942 = vrot.lane.b32.xlu0 %v815, 1
        %v943 = vpop.permute.xlu0 %942
        %944 = vrot.lane.b32.xlu0 %v817, 1
        %v945 = vpop.permute.xlu0 %944
        %v946 = vsel %vm586, %v931, %v939
        %v947 = vsel %vm586, %v933, %v941
        %v948 = vsel %vm586, %v935, %v943
        %v949 = vsel %vm586, %v937, %v945
        %v950 = vsel %vm586, %v939, %v931
        %v951 = vsel %vm586, %v941, %v933
        %v952 = vsel %vm586, %v943, %v935
        %v953 = vsel %vm586, %v945, %v937
        %v954 = vmul.f32 %v950, %v589
        %v955 = vmul.f32 %v946, %v590
        %v956 = vmul.f32 %v951, %v589
        %v957 = vmul.f32 %v947, %v590
        %v958 = vmul.f32 %v952, %v589
        %v959 = vmul.f32 %v948, %v590
        %v960 = vmul.f32 %v953, %v589
        %v961 = vmul.f32 %v949, %v590
        %962 = vrot.lane.b32.xlu0 %v810, 127
        %v963 = vpop.permute.xlu0 %962
        %964 = vrot.lane.b32.xlu0 %v812, 127
        %v965 = vpop.permute.xlu0 %964
        %966 = vrot.lane.b32.xlu0 %v814, 127
        %v967 = vpop.permute.xlu0 %966
        %968 = vrot.lane.b32.xlu0 %v816, 127
        %v969 = vpop.permute.xlu0 %968
        %970 = vrot.lane.b32.xlu0 %v811, 127
        %v971 = vpop.permute.xlu0 %970
        %972 = vrot.lane.b32.xlu0 %v813, 127
        %v973 = vpop.permute.xlu0 %972
        %974 = vrot.lane.b32.xlu0 %v815, 127
        %v975 = vpop.permute.xlu0 %974
        %976 = vrot.lane.b32.xlu0 %v817, 127
        %v977 = vpop.permute.xlu0 %976
        %v978 = vsel %vm602, %v963, %v971
        %v979 = vsel %vm602, %v965, %v973
        %v980 = vsel %vm602, %v967, %v975
        %v981 = vsel %vm602, %v969, %v977
        %v982 = vsel %vm602, %v971, %v963
        %v983 = vsel %vm602, %v973, %v965
        %v984 = vsel %vm602, %v975, %v967
        %v985 = vsel %vm602, %v977, %v969
        %v986 = vmul.f32 %v978, %v605
        %v987 = vmul.f32 %v982, %v606
        %v988 = vmul.f32 %v979, %v605
        %v989 = vmul.f32 %v983, %v606
        %v990 = vmul.f32 %v980, %v605
        %v991 = vmul.f32 %v984, %v606
        %v992 = vmul.f32 %v981, %v605
        %v993 = vmul.f32 %v985, %v606
        %994 = vrot.lane.b32.xlu0 %v810, 113
        %v995 = vpop.permute.xlu0 %994
        %996 = vrot.lane.b32.xlu0 %v812, 113
        %v997 = vpop.permute.xlu0 %996
        %998 = vrot.lane.b32.xlu0 %v814, 113
        %v999 = vpop.permute.xlu0 %998
        %1000 = vrot.lane.b32.xlu0 %v816, 113
        %v1001 = vpop.permute.xlu0 %1000
        %1002 = vrot.lane.b32.xlu0 %v811, 113
        %v1003 = vpop.permute.xlu0 %1002
        %1004 = vrot.lane.b32.xlu0 %v813, 113
        %v1005 = vpop.permute.xlu0 %1004
        %1006 = vrot.lane.b32.xlu0 %v815, 113
        %v1007 = vpop.permute.xlu0 %1006
        %1008 = vrot.lane.b32.xlu0 %v817, 113
        %v1009 = vpop.permute.xlu0 %1008
        %v1010 = vsel %vm618, %v995, %v1003
        %v1011 = vsel %vm618, %v997, %v1005
        %v1012 = vsel %vm618, %v999, %v1007
        %v1013 = vsel %vm618, %v1001, %v1009
        %v1014 = vsel %vm618, %v1003, %v995
        %v1015 = vsel %vm618, %v1005, %v997
        %v1016 = vsel %vm618, %v1007, %v999
        %v1017 = vsel %vm618, %v1009, %v1001
        %v1018 = vmul.f32 %v1010, %v621
        %v1019 = vmul.f32 %v1014, %v622
        %v1020 = vmul.f32 %v1011, %v621
        %v1021 = vmul.f32 %v1015, %v622
        %v1022 = vmul.f32 %v1012, %v621
        %v1023 = vmul.f32 %v1016, %v622
        %v1024 = vmul.f32 %v1013, %v621
        %v1025 = vmul.f32 %v1017, %v622
        %1026 = vrot.lane.b32.xlu0 %v810, 112
        %v1027 = vpop.permute.xlu0 %1026
        %1028 = vrot.lane.b32.xlu0 %v812, 112
        %v1029 = vpop.permute.xlu0 %1028
        %1030 = vrot.lane.b32.xlu0 %v814, 112
        %v1031 = vpop.permute.xlu0 %1030
        %1032 = vrot.lane.b32.xlu0 %v816, 112
        %v1033 = vpop.permute.xlu0 %1032
        %1034 = vrot.lane.b32.xlu0 %v811, 112
        %v1035 = vpop.permute.xlu0 %1034
        %1036 = vrot.lane.b32.xlu0 %v813, 112
        %v1037 = vpop.permute.xlu0 %1036
        %1038 = vrot.lane.b32.xlu0 %v815, 112
        %v1039 = vpop.permute.xlu0 %1038
        %1040 = vrot.lane.b32.xlu0 %v817, 112
        %v1041 = vpop.permute.xlu0 %1040
        %v1042 = vsel %vm634, %v1027, %v1035
        %v1043 = vsel %vm634, %v1029, %v1037
        %v1044 = vsel %vm634, %v1031, %v1039
        %v1045 = vsel %vm634, %v1033, %v1041
        %v1046 = vsel %vm634, %v1035, %v1027
        %v1047 = vsel %vm634, %v1037, %v1029
        %v1048 = vsel %vm634, %v1039, %v1031
        %v1049 = vsel %vm634, %v1041, %v1033
        %v1050 = vmul.f32 %v1042, %v637
        %v1051 = vmul.f32 %v1046, %v638
        %v1052 = vmul.f32 %v1043, %v637
        %v1053 = vmul.f32 %v1047, %v638
        %v1054 = vmul.f32 %v1044, %v637
        %v1055 = vmul.f32 %v1048, %v638
        %v1056 = vmul.f32 %v1045, %v637
        %v1057 = vmul.f32 %v1049, %v638
        %1058 = vrot.lane.b32.xlu0 %v810, 111
        %v1059 = vpop.permute.xlu0 %1058
        %1060 = vrot.lane.b32.xlu0 %v812, 111
        %v1061 = vpop.permute.xlu0 %1060
        %1062 = vrot.lane.b32.xlu0 %v814, 111
        %v1063 = vpop.permute.xlu0 %1062
        %1064 = vrot.lane.b32.xlu0 %v816, 111
        %v1065 = vpop.permute.xlu0 %1064
        %1066 = vrot.lane.b32.xlu0 %v811, 111
        %v1067 = vpop.permute.xlu0 %1066
        %1068 = vrot.lane.b32.xlu0 %v813, 111
        %v1069 = vpop.permute.xlu0 %1068
        %1070 = vrot.lane.b32.xlu0 %v815, 111
        %v1071 = vpop.permute.xlu0 %1070
        %1072 = vrot.lane.b32.xlu0 %v817, 111
        %v1073 = vpop.permute.xlu0 %1072
        %v1074 = vsel %vm650, %v1059, %v1067
        %v1075 = vsel %vm650, %v1061, %v1069
        %v1076 = vsel %vm650, %v1063, %v1071
        %v1077 = vsel %vm650, %v1065, %v1073
        %v1078 = vsel %vm650, %v1067, %v1059
        %v1079 = vsel %vm650, %v1069, %v1061
        %v1080 = vsel %vm650, %v1071, %v1063
        %v1081 = vsel %vm650, %v1073, %v1065
        %v1082 = vmul.f32 %v1074, %v653
        %v1083 = vmul.f32 %v1078, %v654
        %v1084 = vmul.f32 %v1075, %v653
        %v1085 = vmul.f32 %v1079, %v654
        %v1086 = vmul.f32 %v1076, %v653
        %v1087 = vmul.f32 %v1080, %v654
        %v1088 = vmul.f32 %v1077, %v653
        %v1089 = vmul.f32 %v1081, %v654
        %1091 = vset.pattern.permute.xlu0 0
        %1092 = vperm.xlu0 %1091, %v830
        %v1093 = vpop.permute.xlu0 %1092
        %1096 = vset.pattern.permute.xlu0 0
        %1097 = vperm.xlu0 %1096, %v831
        %v1098 = vpop.permute.xlu0 %1097
        %1101 = vset.pattern.permute.xlu0 0
        %1102 = vperm.xlu0 %1101, %v832
        %v1103 = vpop.permute.xlu0 %1102
        %1106 = vset.pattern.permute.xlu0 0
        %1107 = vperm.xlu0 %1106, %v833
        %v1108 = vpop.permute.xlu0 %1107
        %vm1110 = vcmask 261120
        %v1112 = vsel %vm1110, %v820, 0
        %v1115 = vsel %vm1110, %v823, 0
        %v1118 = vsel %vm1110, %v826, 0
        %v1121 = vsel %vm1110, %v829, 0
        %1123 = vmatpush.msra.mxu0 %v960
        %1124 = vmatpush.msra.mxu0 %v958
        %1125 = vmatpush.msra.mxu0 %v956
        %1126 = vmatpush.msra.mxu0 %v954
        %1127 = vmatpush.msra.mxu0 %v928
        %1128 = vmatpush.msra.mxu0 %v926
        %1129 = vmatpush.msra.mxu0 %v924
        %1130 = vmatpush.msra.mxu0 %v922
        %1131 = vmatpush.msra.mxu0 %v896
        %1132 = vmatpush.msra.mxu0 %v894
        %1133 = vmatpush.msra.mxu0 %v892
        %1134 = vmatpush.msra.mxu0 %v890
        %1135 = vmatpush.msra.mxu0 %v864
        %1136 = vmatpush.msra.mxu0 %v862
        %1137 = vmatpush.msra.mxu0 %v860
        %1138 = vmatpush.msra.mxu0 %v858
        %1139 = vmatmul.f32.gmra.mxu0 %v818
        %v1140 = vpop.f32.mrf.mxu0
        %v1141 = vadd.f32 %v1093, %v1140
        %1142 = vmatmul.f32.gmra.mxu0 %v821
        %v1143 = vpop.f32.mrf.mxu0
        %v1144 = vadd.f32 %v1098, %v1143
        %1145 = vmatmul.f32.gmra.mxu0 %v824
        %v1146 = vpop.f32.mrf.mxu0
        %v1147 = vadd.f32 %v1103, %v1146
        %1148 = vmatmul.f32.gmra.mxu0 %v827
        %v1149 = vpop.f32.mrf.mxu0
        %v1150 = vadd.f32 %v1108, %v1149
        %1151 = vdwg.mxu0
        %1152 = vmatpush.msra.mxu0 %v1056
        %1153 = vmatpush.msra.mxu0 %v1054
        %1154 = vmatpush.msra.mxu0 %v1052
        %1155 = vmatpush.msra.mxu0 %v1050
        %1156 = vmatpush.msra.mxu0 %v1024
        %1157 = vmatpush.msra.mxu0 %v1022
        %1158 = vmatpush.msra.mxu0 %v1020
        %1159 = vmatpush.msra.mxu0 %v1018
        %1160 = vmatpush.msra.mxu0 %v992
        %1161 = vmatpush.msra.mxu0 %v990
        %1162 = vmatpush.msra.mxu0 %v988
        %1163 = vmatpush.msra.mxu0 %v986
        %1164 = vmatpush.msra.mxu0 %v816
        %1165 = vmatpush.msra.mxu0 %v814
        %1166 = vmatpush.msra.mxu0 %v812
        %1167 = vmatpush.msra.mxu0 %v810
        %1168 = vmatmul.f32.gmra.mxu0 %v819
        %v1169 = vpop.f32.mrf.mxu0
        %v1170 = vadd.f32 %v1141, %v1169
        %1171 = vmatmul.f32.gmra.mxu0 %v822
        %v1172 = vpop.f32.mrf.mxu0
        %v1173 = vadd.f32 %v1144, %v1172
        %1174 = vmatmul.f32.gmra.mxu0 %v825
        %v1175 = vpop.f32.mrf.mxu0
        %v1176 = vadd.f32 %v1147, %v1175
        %1177 = vmatmul.f32.gmra.mxu0 %v828
        %v1178 = vpop.f32.mrf.mxu0
        %v1179 = vadd.f32 %v1150, %v1178
        %1180 = vdwg.mxu0
        %1181 = vmatpush.msra.mxu0 0.0
        %1182 = vmatpush.msra.mxu0 0.0
        %1183 = vmatpush.msra.mxu0 0.0
        %1184 = vmatpush.msra.mxu0 0.0
        %1185 = vmatpush.msra.mxu0 0.0
        %1186 = vmatpush.msra.mxu0 0.0
        %1187 = vmatpush.msra.mxu0 0.0
        %1188 = vmatpush.msra.mxu0 0.0
        %1189 = vmatpush.msra.mxu0 0.0
        %1190 = vmatpush.msra.mxu0 0.0
        %1191 = vmatpush.msra.mxu0 0.0
        %1192 = vmatpush.msra.mxu0 0.0
        %1193 = vmatpush.msra.mxu0 %v1088
        %1194 = vmatpush.msra.mxu0 %v1086
        %1195 = vmatpush.msra.mxu0 %v1084
        %1196 = vmatpush.msra.mxu0 %v1082
        %1197 = vmatmul.f32.gmra.mxu0 %v1112
        %v1198 = vpop.f32.mrf.mxu0
        %v1199 = vadd.f32 %v1170, %v1198
        %1200 = vmatmul.f32.gmra.mxu0 %v1115
        %v1201 = vpop.f32.mrf.mxu0
        %v1202 = vadd.f32 %v1173, %v1201
        %1203 = vmatmul.f32.gmra.mxu0 %v1118
        %v1204 = vpop.f32.mrf.mxu0
        %v1205 = vadd.f32 %v1176, %v1204
        %1206 = vmatmul.f32.gmra.mxu0 %v1121
        %v1207 = vpop.f32.mrf.mxu0
        %v1208 = vadd.f32 %v1179, %v1207
        %1209 = vdwg.mxu0
        %1210 = vmatpush.msra.mxu0 %v961
        %1211 = vmatpush.msra.mxu0 %v959
        %1212 = vmatpush.msra.mxu0 %v957
        %1213 = vmatpush.msra.mxu0 %v955
        %1214 = vmatpush.msra.mxu0 %v929
        %1215 = vmatpush.msra.mxu0 %v927
        %1216 = vmatpush.msra.mxu0 %v925
        %1217 = vmatpush.msra.mxu0 %v923
        %1218 = vmatpush.msra.mxu0 %v897
        %1219 = vmatpush.msra.mxu0 %v895
        %1220 = vmatpush.msra.mxu0 %v893
        %1221 = vmatpush.msra.mxu0 %v891
        %1222 = vmatpush.msra.mxu0 %v865
        %1223 = vmatpush.msra.mxu0 %v863
        %1224 = vmatpush.msra.mxu0 %v861
        %1225 = vmatpush.msra.mxu0 %v859
        %1226 = vmatmul.f32.gmra.mxu0 %v818
        %v1227 = vpop.f32.mrf.mxu0
        %v1228 = vadd.f32 %v1093, %v1227
        %1229 = vmatmul.f32.gmra.mxu0 %v821
        %v1230 = vpop.f32.mrf.mxu0
        %v1231 = vadd.f32 %v1098, %v1230
        %1232 = vmatmul.f32.gmra.mxu0 %v824
        %v1233 = vpop.f32.mrf.mxu0
        %v1234 = vadd.f32 %v1103, %v1233
        %1235 = vmatmul.f32.gmra.mxu0 %v827
        %v1236 = vpop.f32.mrf.mxu0
        %v1237 = vadd.f32 %v1108, %v1236
        %1238 = vdwg.mxu0
        %1239 = vmatpush.msra.mxu0 %v1057
        %1240 = vmatpush.msra.mxu0 %v1055
        %1241 = vmatpush.msra.mxu0 %v1053
        %1242 = vmatpush.msra.mxu0 %v1051
        %1243 = vmatpush.msra.mxu0 %v1025
        %1244 = vmatpush.msra.mxu0 %v1023
        %1245 = vmatpush.msra.mxu0 %v1021
        %1246 = vmatpush.msra.mxu0 %v1019
        %1247 = vmatpush.msra.mxu0 %v993
        %1248 = vmatpush.msra.mxu0 %v991
        %1249 = vmatpush.msra.mxu0 %v989
        %1250 = vmatpush.msra.mxu0 %v987
        %1251 = vmatpush.msra.mxu0 %v817
        %1252 = vmatpush.msra.mxu0 %v815
        %1253 = vmatpush.msra.mxu0 %v813
        %1254 = vmatpush.msra.mxu0 %v811
        %1255 = vmatmul.f32.gmra.mxu0 %v819
        %v1256 = vpop.f32.mrf.mxu0
        %v1257 = vadd.f32 %v1228, %v1256
        %1258 = vmatmul.f32.gmra.mxu0 %v822
        %v1259 = vpop.f32.mrf.mxu0
        %v1260 = vadd.f32 %v1231, %v1259
        %1261 = vmatmul.f32.gmra.mxu0 %v825
        %v1262 = vpop.f32.mrf.mxu0
        %v1263 = vadd.f32 %v1234, %v1262
        %1264 = vmatmul.f32.gmra.mxu0 %v828
        %v1265 = vpop.f32.mrf.mxu0
        %v1266 = vadd.f32 %v1237, %v1265
        %1267 = vdwg.mxu0
        %1268 = vmatpush.msra.mxu0 0.0
        %1269 = vmatpush.msra.mxu0 0.0
        %1270 = vmatpush.msra.mxu0 0.0
        %1271 = vmatpush.msra.mxu0 0.0
        %1272 = vmatpush.msra.mxu0 0.0
        %1273 = vmatpush.msra.mxu0 0.0
        %1274 = vmatpush.msra.mxu0 0.0
        %1275 = vmatpush.msra.mxu0 0.0
        %1276 = vmatpush.msra.mxu0 0.0
        %1277 = vmatpush.msra.mxu0 0.0
        %1278 = vmatpush.msra.mxu0 0.0
        %1279 = vmatpush.msra.mxu0 0.0
        %1280 = vmatpush.msra.mxu0 %v1089
        %1281 = vmatpush.msra.mxu0 %v1087
        %1282 = vmatpush.msra.mxu0 %v1085
        %1283 = vmatpush.msra.mxu0 %v1083
        %1284 = vmatmul.f32.gmra.mxu0 %v1112
        %v1285 = vpop.f32.mrf.mxu0
        %v1286 = vadd.f32 %v1257, %v1285
        %1287 = vmatmul.f32.gmra.mxu0 %v1115
        %v1288 = vpop.f32.mrf.mxu0
        %v1289 = vadd.f32 %v1260, %v1288
        %1290 = vmatmul.f32.gmra.mxu0 %v1118
        %v1291 = vpop.f32.mrf.mxu0
        %v1292 = vadd.f32 %v1263, %v1291
        %1293 = vmatmul.f32.gmra.mxu0 %v1121
        %v1294 = vpop.f32.mrf.mxu0
        %v1295 = vadd.f32 %v1266, %v1294
        %1296 = vdwg.mxu0
        %v1297 = vmax.f32 %v1199, 0.0
        %v1298 = vmax.f32 %v1286, 0.0
        %v1299 = vmax.f32 %v1202, 0.0
        %v1300 = vmax.f32 %v1289, 0.0
        %v1301 = vmax.f32 %v1205, 0.0
        %v1302 = vmax.f32 %v1292, 0.0
        %v1303 = vmax.f32 %v1208, 0.0
        %v1304 = vmax.f32 %v1295, 0.0
        %v1305 = vld [vmem:[%s11] sm:$0x3f]
        %v1306 = vld [vmem:[%s12] sm:$0x3]
        %1307 = vrot.lane.b32.xlu0 %v1297, 17
        %v1308 = vpop.permute.xlu0 %1307
        %1309 = vrot.lane.b32.xlu0 %v1299, 17
        %v1310 = vpop.permute.xlu0 %1309
        %1311 = vrot.lane.b32.xlu0 %v1301, 17
        %v1312 = vpop.permute.xlu0 %1311
        %1313 = vrot.lane.b32.xlu0 %v1303, 17
        %v1314 = vpop.permute.xlu0 %1313
        %1315 = vrot.lane.b32.xlu0 %v1298, 17
        %v1316 = vpop.permute.xlu0 %1315
        %1317 = vrot.lane.b32.xlu0 %v1300, 17
        %v1318 = vpop.permute.xlu0 %1317
        %1319 = vrot.lane.b32.xlu0 %v1302, 17
        %v1320 = vpop.permute.xlu0 %1319
        %1321 = vrot.lane.b32.xlu0 %v1304, 17
        %v1322 = vpop.permute.xlu0 %1321
        %v1323 = vsel %vm538, %v1308, %v1316
        %v1324 = vsel %vm538, %v1310, %v1318
        %v1325 = vsel %vm538, %v1312, %v1320
        %v1326 = vsel %vm538, %v1314, %v1322
        %v1327 = vsel %vm538, %v1316, %v1308
        %v1328 = vsel %vm538, %v1318, %v1310
        %v1329 = vsel %vm538, %v1320, %v1312
        %v1330 = vsel %vm538, %v1322, %v1314
        %v1331 = vmul.f32 %v1327, %v541
        %v1332 = vmul.f32 %v1323, %v542
        %v1333 = vmul.f32 %v1328, %v541
        %v1334 = vmul.f32 %v1324, %v542
        %v1335 = vmul.f32 %v1329, %v541
        %v1336 = vmul.f32 %v1325, %v542
        %v1337 = vmul.f32 %v1330, %v541
        %v1338 = vmul.f32 %v1326, %v542
        %1339 = vrot.lane.b32.xlu0 %v1297, 16
        %v1340 = vpop.permute.xlu0 %1339
        %1341 = vrot.lane.b32.xlu0 %v1299, 16
        %v1342 = vpop.permute.xlu0 %1341
        %1343 = vrot.lane.b32.xlu0 %v1301, 16
        %v1344 = vpop.permute.xlu0 %1343
        %1345 = vrot.lane.b32.xlu0 %v1303, 16
        %v1346 = vpop.permute.xlu0 %1345
        %1347 = vrot.lane.b32.xlu0 %v1298, 16
        %v1348 = vpop.permute.xlu0 %1347
        %1349 = vrot.lane.b32.xlu0 %v1300, 16
        %v1350 = vpop.permute.xlu0 %1349
        %1351 = vrot.lane.b32.xlu0 %v1302, 16
        %v1352 = vpop.permute.xlu0 %1351
        %1353 = vrot.lane.b32.xlu0 %v1304, 16
        %v1354 = vpop.permute.xlu0 %1353
        %v1355 = vsel %vm554, %v1340, %v1348
        %v1356 = vsel %vm554, %v1342, %v1350
        %v1357 = vsel %vm554, %v1344, %v1352
        %v1358 = vsel %vm554, %v1346, %v1354
        %v1359 = vsel %vm554, %v1348, %v1340
        %v1360 = vsel %vm554, %v1350, %v1342
        %v1361 = vsel %vm554, %v1352, %v1344
        %v1362 = vsel %vm554, %v1354, %v1346
        %v1363 = vmul.f32 %v1359, %v557
        %v1364 = vmul.f32 %v1355, %v558
        %v1365 = vmul.f32 %v1360, %v557
        %v1366 = vmul.f32 %v1356, %v558
        %v1367 = vmul.f32 %v1361, %v557
        %v1368 = vmul.f32 %v1357, %v558
        %v1369 = vmul.f32 %v1362, %v557
        %v1370 = vmul.f32 %v1358, %v558
        %1371 = vrot.lane.b32.xlu0 %v1297, 15
        %v1372 = vpop.permute.xlu0 %1371
        %1373 = vrot.lane.b32.xlu0 %v1299, 15
        %v1374 = vpop.permute.xlu0 %1373
        %1375 = vrot.lane.b32.xlu0 %v1301, 15
        %v1376 = vpop.permute.xlu0 %1375
        %1377 = vrot.lane.b32.xlu0 %v1303, 15
        %v1378 = vpop.permute.xlu0 %1377
        %1379 = vrot.lane.b32.xlu0 %v1298, 15
        %v1380 = vpop.permute.xlu0 %1379
        %1381 = vrot.lane.b32.xlu0 %v1300, 15
        %v1382 = vpop.permute.xlu0 %1381
        %1383 = vrot.lane.b32.xlu0 %v1302, 15
        %v1384 = vpop.permute.xlu0 %1383
        %1385 = vrot.lane.b32.xlu0 %v1304, 15
        %v1386 = vpop.permute.xlu0 %1385
        %v1387 = vsel %vm570, %v1372, %v1380
        %v1388 = vsel %vm570, %v1374, %v1382
        %v1389 = vsel %vm570, %v1376, %v1384
        %v1390 = vsel %vm570, %v1378, %v1386
        %v1391 = vsel %vm570, %v1380, %v1372
        %v1392 = vsel %vm570, %v1382, %v1374
        %v1393 = vsel %vm570, %v1384, %v1376
        %v1394 = vsel %vm570, %v1386, %v1378
        %v1395 = vmul.f32 %v1391, %v573
        %v1396 = vmul.f32 %v1387, %v574
        %v1397 = vmul.f32 %v1392, %v573
        %v1398 = vmul.f32 %v1388, %v574
        %v1399 = vmul.f32 %v1393, %v573
        %v1400 = vmul.f32 %v1389, %v574
        %v1401 = vmul.f32 %v1394, %v573
        %v1402 = vmul.f32 %v1390, %v574
        %1403 = vrot.lane.b32.xlu0 %v1297, 1
        %v1404 = vpop.permute.xlu0 %1403
        %1405 = vrot.lane.b32.xlu0 %v1299, 1
        %v1406 = vpop.permute.xlu0 %1405
        %1407 = vrot.lane.b32.xlu0 %v1301, 1
        %v1408 = vpop.permute.xlu0 %1407
        %1409 = vrot.lane.b32.xlu0 %v1303, 1
        %v1410 = vpop.permute.xlu0 %1409
        %1411 = vrot.lane.b32.xlu0 %v1298, 1
        %v1412 = vpop.permute.xlu0 %1411
        %1413 = vrot.lane.b32.xlu0 %v1300, 1
        %v1414 = vpop.permute.xlu0 %1413
        %1415 = vrot.lane.b32.xlu0 %v1302, 1
        %v1416 = vpop.permute.xlu0 %1415
        %1417 = vrot.lane.b32.xlu0 %v1304, 1
        %v1418 = vpop.permute.xlu0 %1417
        %v1419 = vsel %vm586, %v1404, %v1412
        %v1420 = vsel %vm586, %v1406, %v1414
        %v1421 = vsel %vm586, %v1408, %v1416
        %v1422 = vsel %vm586, %v1410, %v1418
        %v1423 = vsel %vm586, %v1412, %v1404
        %v1424 = vsel %vm586, %v1414, %v1406
        %v1425 = vsel %vm586, %v1416, %v1408
        %v1426 = vsel %vm586, %v1418, %v1410
        %v1427 = vmul.f32 %v1423, %v589
        %v1428 = vmul.f32 %v1419, %v590
        %v1429 = vmul.f32 %v1424, %v589
        %v1430 = vmul.f32 %v1420, %v590
        %v1431 = vmul.f32 %v1425, %v589
        %v1432 = vmul.f32 %v1421, %v590
        %v1433 = vmul.f32 %v1426, %v589
        %v1434 = vmul.f32 %v1422, %v590
        %1435 = vrot.lane.b32.xlu0 %v1297, 127
        %v1436 = vpop.permute.xlu0 %1435
        %1437 = vrot.lane.b32.xlu0 %v1299, 127
        %v1438 = vpop.permute.xlu0 %1437
        %1439 = vrot.lane.b32.xlu0 %v1301, 127
        %v1440 = vpop.permute.xlu0 %1439
        %1441 = vrot.lane.b32.xlu0 %v1303, 127
        %v1442 = vpop.permute.xlu0 %1441
        %1443 = vrot.lane.b32.xlu0 %v1298, 127
        %v1444 = vpop.permute.xlu0 %1443
        %1445 = vrot.lane.b32.xlu0 %v1300, 127
        %v1446 = vpop.permute.xlu0 %1445
        %1447 = vrot.lane.b32.xlu0 %v1302, 127
        %v1448 = vpop.permute.xlu0 %1447
        %1449 = vrot.lane.b32.xlu0 %v1304, 127
        %v1450 = vpop.permute.xlu0 %1449
        %v1451 = vsel %vm602, %v1436, %v1444
        %v1452 = vsel %vm602, %v1438, %v1446
        %v1453 = vsel %vm602, %v1440, %v1448
        %v1454 = vsel %vm602, %v1442, %v1450
        %v1455 = vsel %vm602, %v1444, %v1436
        %v1456 = vsel %vm602, %v1446, %v1438
        %v1457 = vsel %vm602, %v1448, %v1440
        %v1458 = vsel %vm602, %v1450, %v1442
        %v1459 = vmul.f32 %v1451, %v605
        %v1460 = vmul.f32 %v1455, %v606
        %v1461 = vmul.f32 %v1452, %v605
        %v1462 = vmul.f32 %v1456, %v606
        %v1463 = vmul.f32 %v1453, %v605
        %v1464 = vmul.f32 %v1457, %v606
        %v1465 = vmul.f32 %v1454, %v605
        %v1466 = vmul.f32 %v1458, %v606
        %1467 = vrot.lane.b32.xlu0 %v1297, 113
        %v1468 = vpop.permute.xlu0 %1467
        %1469 = vrot.lane.b32.xlu0 %v1299, 113
        %v1470 = vpop.permute.xlu0 %1469
        %1471 = vrot.lane.b32.xlu0 %v1301, 113
        %v1472 = vpop.permute.xlu0 %1471
        %1473 = vrot.lane.b32.xlu0 %v1303, 113
        %v1474 = vpop.permute.xlu0 %1473
        %1475 = vrot.lane.b32.xlu0 %v1298, 113
        %v1476 = vpop.permute.xlu0 %1475
        %1477 = vrot.lane.b32.xlu0 %v1300, 113
        %v1478 = vpop.permute.xlu0 %1477
        %1479 = vrot.lane.b32.xlu0 %v1302, 113
        %v1480 = vpop.permute.xlu0 %1479
        %1481 = vrot.lane.b32.xlu0 %v1304, 113
        %v1482 = vpop.permute.xlu0 %1481
        %v1483 = vsel %vm618, %v1468, %v1476
        %v1484 = vsel %vm618, %v1470, %v1478
        %v1485 = vsel %vm618, %v1472, %v1480
        %v1486 = vsel %vm618, %v1474, %v1482
        %v1487 = vsel %vm618, %v1476, %v1468
        %v1488 = vsel %vm618, %v1478, %v1470
        %v1489 = vsel %vm618, %v1480, %v1472
        %v1490 = vsel %vm618, %v1482, %v1474
        %v1491 = vmul.f32 %v1483, %v621
        %v1492 = vmul.f32 %v1487, %v622
        %v1493 = vmul.f32 %v1484, %v621
        %v1494 = vmul.f32 %v1488, %v622
        %v1495 = vmul.f32 %v1485, %v621
        %v1496 = vmul.f32 %v1489, %v622
        %v1497 = vmul.f32 %v1486, %v621
        %v1498 = vmul.f32 %v1490, %v622
        %1499 = vrot.lane.b32.xlu0 %v1297, 112
        %v1500 = vpop.permute.xlu0 %1499
        %1501 = vrot.lane.b32.xlu0 %v1299, 112
        %v1502 = vpop.permute.xlu0 %1501
        %1503 = vrot.lane.b32.xlu0 %v1301, 112
        %v1504 = vpop.permute.xlu0 %1503
        %1505 = vrot.lane.b32.xlu0 %v1303, 112
        %v1506 = vpop.permute.xlu0 %1505
        %1507 = vrot.lane.b32.xlu0 %v1298, 112
        %v1508 = vpop.permute.xlu0 %1507
        %1509 = vrot.lane.b32.xlu0 %v1300, 112
        %v1510 = vpop.permute.xlu0 %1509
        %1511 = vrot.lane.b32.xlu0 %v1302, 112
        %v1512 = vpop.permute.xlu0 %1511
        %1513 = vrot.lane.b32.xlu0 %v1304, 112
        %v1514 = vpop.permute.xlu0 %1513
        %v1515 = vsel %vm634, %v1500, %v1508
        %v1516 = vsel %vm634, %v1502, %v1510
        %v1517 = vsel %vm634, %v1504, %v1512
        %v1518 = vsel %vm634, %v1506, %v1514
        %v1519 = vsel %vm634, %v1508, %v1500
        %v1520 = vsel %vm634, %v1510, %v1502
        %v1521 = vsel %vm634, %v1512, %v1504
        %v1522 = vsel %vm634, %v1514, %v1506
        %v1523 = vmul.f32 %v1515, %v637
        %v1524 = vmul.f32 %v1519, %v638
        %v1525 = vmul.f32 %v1516, %v637
        %v1526 = vmul.f32 %v1520, %v638
        %v1527 = vmul.f32 %v1517, %v637
        %v1528 = vmul.f32 %v1521, %v638
        %v1529 = vmul.f32 %v1518, %v637
        %v1530 = vmul.f32 %v1522, %v638
        %1531 = vrot.lane.b32.xlu0 %v1297, 111
        %v1532 = vpop.permute.xlu0 %1531
        %1533 = vrot.lane.b32.xlu0 %v1299, 111
        %v1534 = vpop.permute.xlu0 %1533
        %1535 = vrot.lane.b32.xlu0 %v1301, 111
        %v1536 = vpop.permute.xlu0 %1535
        %1537 = vrot.lane.b32.xlu0 %v1303, 111
        %v1538 = vpop.permute.xlu0 %1537
        %1539 = vrot.lane.b32.xlu0 %v1298, 111
        %v1540 = vpop.permute.xlu0 %1539
        %1541 = vrot.lane.b32.xlu0 %v1300, 111
        %v1542 = vpop.permute.xlu0 %1541
        %1543 = vrot.lane.b32.xlu0 %v1302, 111
        %v1544 = vpop.permute.xlu0 %1543
        %1545 = vrot.lane.b32.xlu0 %v1304, 111
        %v1546 = vpop.permute.xlu0 %1545
        %v1547 = vsel %vm650, %v1532, %v1540
        %v1548 = vsel %vm650, %v1534, %v1542
        %v1549 = vsel %vm650, %v1536, %v1544
        %v1550 = vsel %vm650, %v1538, %v1546
        %v1551 = vsel %vm650, %v1540, %v1532
        %v1552 = vsel %vm650, %v1542, %v1534
        %v1553 = vsel %vm650, %v1544, %v1536
        %v1554 = vsel %vm650, %v1546, %v1538
        %v1555 = vmul.f32 %v1547, %v653
        %v1556 = vmul.f32 %v1551, %v654
        %v1557 = vmul.f32 %v1548, %v653
        %v1558 = vmul.f32 %v1552, %v654
        %v1559 = vmul.f32 %v1549, %v653
        %v1560 = vmul.f32 %v1553, %v654
        %v1561 = vmul.f32 %v1550, %v653
        %v1562 = vmul.f32 %v1554, %v654
        %1564 = vset.pattern.permute.xlu0 0
        %1565 = vperm.xlu0 %1564, %v1306
        %v1566 = vpop.permute.xlu0 %1565
        %1569 = vst [vmem:[#allocation1] ss:$4 sm:$0xff] %v1305
        %v1570 = vld.sshfl [vmem:[#allocation1] sm:$0xff pattern:$0x73625140]
        %v1571 = vld.sshfl [vmem:[#allocation1 + $0x8] sm:$0xff pattern:$0x73625140]
        %v1572 = vld.sshfl [vmem:[#allocation1 + $0x10] sm:$0xff pattern:$0x73625140]
        %v1575 = vsel %vm1110, %v1572, 0
        %1577 = vmatpush.msra.mxu0 %v1433
        %1578 = vmatpush.msra.mxu0 %v1431
        %1579 = vmatpush.msra.mxu0 %v1429
        %1580 = vmatpush.msra.mxu0 %v1427
        %1581 = vmatpush.msra.mxu0 %v1401
        %1582 = vmatpush.msra.mxu0 %v1399
        %1583 = vmatpush.msra.mxu0 %v1397
        %1584 = vmatpush.msra.mxu0 %v1395
        %1585 = vmatpush.msra.mxu0 %v1369
        %1586 = vmatpush.msra.mxu0 %v1367
        %1587 = vmatpush.msra.mxu0 %v1365
        %1588 = vmatpush.msra.mxu0 %v1363
        %1589 = vmatpush.msra.mxu0 %v1337
        %1590 = vmatpush.msra.mxu0 %v1335
        %1591 = vmatpush.msra.mxu0 %v1333
        %1592 = vmatpush.msra.mxu0 %v1331
        %1593 = vmatmul.f32.gmra.mxu0 %v1570
        %v1594 = vpop.f32.mrf.mxu0
        %v1595 = vadd.f32 %v1566, %v1594
        %1596 = vdwg.mxu0
        %1597 = vmatpush.msra.mxu0 %v1529
        %1598 = vmatpush.msra.mxu0 %v1527
        %1599 = vmatpush.msra.mxu0 %v1525
        %1600 = vmatpush.msra.mxu0 %v1523
        %1601 = vmatpush.msra.mxu0 %v1497
        %1602 = vmatpush.msra.mxu0 %v1495
        %1603 = vmatpush.msra.mxu0 %v1493
        %1604 = vmatpush.msra.mxu0 %v1491
        %1605 = vmatpush.msra.mxu0 %v1465
        %1606 = vmatpush.msra.mxu0 %v1463
        %1607 = vmatpush.msra.mxu0 %v1461
        %1608 = vmatpush.msra.mxu0 %v1459
        %1609 = vmatpush.msra.mxu0 %v1303
        %1610 = vmatpush.msra.mxu0 %v1301
        %1611 = vmatpush.msra.mxu0 %v1299
        %1612 = vmatpush.msra.mxu0 %v1297
        %1613 = vmatmul.f32.gmra.mxu0 %v1571
        %v1614 = vpop.f32.mrf.mxu0
        %v1615 = vadd.f32 %v1595, %v1614
        %1616 = vdwg.mxu0
        %1617 = vmatpush.msra.mxu0 0.0
        %1618 = vmatpush.msra.mxu0 0.0
        %1619 = vmatpush.msra.mxu0 0.0
        %1620 = vmatpush.msra.mxu0 0.0
        %1621 = vmatpush.msra.mxu0 0.0
        %1622 = vmatpush.msra.mxu0 0.0
        %1623 = vmatpush.msra.mxu0 0.0
        %1624 = vmatpush.msra.mxu0 0.0
        %1625 = vmatpush.msra.mxu0 0.0
        %1626 = vmatpush.msra.mxu0 0.0
        %1627 = vmatpush.msra.mxu0 0.0
        %1628 = vmatpush.msra.mxu0 0.0
        %1629 = vmatpush.msra.mxu0 %v1561
        %1630 = vmatpush.msra.mxu0 %v1559
        %1631 = vmatpush.msra.mxu0 %v1557
        %1632 = vmatpush.msra.mxu0 %v1555
        %1633 = vmatmul.f32.gmra.mxu0 %v1575
        %v1634 = vpop.f32.mrf.mxu0
        %v1635 = vadd.f32 %v1615, %v1634
        %1636 = vdwg.mxu0
        %1637 = vmatpush.msra.mxu0 %v1434
        %1638 = vmatpush.msra.mxu0 %v1432
        %1639 = vmatpush.msra.mxu0 %v1430
        %1640 = vmatpush.msra.mxu0 %v1428
        %1641 = vmatpush.msra.mxu0 %v1402
        %1642 = vmatpush.msra.mxu0 %v1400
        %1643 = vmatpush.msra.mxu0 %v1398
        %1644 = vmatpush.msra.mxu0 %v1396
        %1645 = vmatpush.msra.mxu0 %v1370
        %1646 = vmatpush.msra.mxu0 %v1368
        %1647 = vmatpush.msra.mxu0 %v1366
        %1648 = vmatpush.msra.mxu0 %v1364
        %1649 = vmatpush.msra.mxu0 %v1338
        %1650 = vmatpush.msra.mxu0 %v1336
        %1651 = vmatpush.msra.mxu0 %v1334
        %1652 = vmatpush.msra.mxu0 %v1332
        %1653 = vmatmul.f32.gmra.mxu0 %v1570
        %v1654 = vpop.f32.mrf.mxu0
        %v1655 = vadd.f32 %v1566, %v1654
        %1656 = vdwg.mxu0
        %1657 = vmatpush.msra.mxu0 %v1530
        %1658 = vmatpush.msra.mxu0 %v1528
        %1659 = vmatpush.msra.mxu0 %v1526
        %1660 = vmatpush.msra.mxu0 %v1524
        %1661 = vmatpush.msra.mxu0 %v1498
        %1662 = vmatpush.msra.mxu0 %v1496
        %1663 = vmatpush.msra.mxu0 %v1494
        %1664 = vmatpush.msra.mxu0 %v1492
        %1665 = vmatpush.msra.mxu0 %v1466
        %1666 = vmatpush.msra.mxu0 %v1464
        %1667 = vmatpush.msra.mxu0 %v1462
        %1668 = vmatpush.msra.mxu0 %v1460
        %1669 = vmatpush.msra.mxu0 %v1304
        %1670 = vmatpush.msra.mxu0 %v1302
        %1671 = vmatpush.msra.mxu0 %v1300
        %1672 = vmatpush.msra.mxu0 %v1298
        %1673 = vmatmul.f32.gmra.mxu0 %v1571
        %v1674 = vpop.f32.mrf.mxu0
        %v1675 = vadd.f32 %v1655, %v1674
        %1676 = vdwg.mxu0
        %1677 = vmatpush.msra.mxu0 0.0
        %1678 = vmatpush.msra.mxu0 0.0
        %1679 = vmatpush.msra.mxu0 0.0
        %1680 = vmatpush.msra.mxu0 0.0
        %1681 = vmatpush.msra.mxu0 0.0
        %1682 = vmatpush.msra.mxu0 0.0
        %1683 = vmatpush.msra.mxu0 0.0
        %1684 = vmatpush.msra.mxu0 0.0
        %1685 = vmatpush.msra.mxu0 0.0
        %1686 = vmatpush.msra.mxu0 0.0
        %1687 = vmatpush.msra.mxu0 0.0
        %1688 = vmatpush.msra.mxu0 0.0
        %1689 = vmatpush.msra.mxu0 %v1562
        %1690 = vmatpush.msra.mxu0 %v1560
        %1691 = vmatpush.msra.mxu0 %v1558
        %1692 = vmatpush.msra.mxu0 %v1556
        %1693 = vmatmul.f32.gmra.mxu0 %v1575
        %v1694 = vpop.f32.mrf.mxu0
        %v1695 = vadd.f32 %v1675, %v1694
        %1696 = vdwg.mxu0
        %v1699 = vrot.slane %v1695, 6
        %v1700 = vsel %vm698, %v1635, %v1699
        %v1702 = vadd.f32 %v513, %v1700
        %v1703 = vld [vmem:[#allocation3] sm:$0xff]
        %v1704 = vld [vmem:[#allocation3 + $0x8] sm:$0xff]
        %v1705 = vld [vmem:[#allocation3 + $0x10] sm:$0xff]
        %v1706 = vld [vmem:[#allocation3 + $0x18] sm:$0xff]
        %v1707 = vld [vmem:[#allocation3 + $0x20] sm:$0xff]
        %v1708 = vld [vmem:[#allocation3 + $0x28] sm:$0xff]
        %v1709 = vld [vmem:[#allocation3 + $0x30] sm:$0xff]
        %v1710 = vld [vmem:[#allocation3 + $0x38] sm:$0xff]
        %v1711 = vld [vmem:[#allocation3 + $0x40] sm:$0xff]
        %v1712 = vld [vmem:[#allocation3 + $0x48] sm:$0xff]
        %v1713 = vld [vmem:[#allocation3 + $0x50] sm:$0xff]
        %v1714 = vld [vmem:[#allocation3 + $0x58] sm:$0xff]
        %v1715 = vld [vmem:[#allocation3 + $0x60] sm:$0xff]
        %v1716 = vld [vmem:[#allocation3 + $0x68] sm:$0xff]
        %v1717 = vld [vmem:[#allocation3 + $0x70] sm:$0xff]
        %v1718 = vld [vmem:[#allocation3 + $0x78] sm:$0xff]
        %v1719 = vld [vmem:[#allocation3 + $0x80] sm:$0xff]
        %v1720 = vld [vmem:[#allocation3 + $0x88] sm:$0xff]
        %v1721 = vld [vmem:[#allocation3 + $0x90] sm:$0xff]
        %v1722 = vld [vmem:[#allocation3 + $0x98] sm:$0xff]
        %v1723 = vld [vmem:[#allocation3 + $0xa0] sm:$0xff]
        %v1724 = vld [vmem:[#allocation3 + $0xa8] sm:$0xff]
        %v1725 = vld [vmem:[#allocation3 + $0xb0] sm:$0xff]
        %v1726 = vld [vmem:[#allocation3 + $0xb8] sm:$0xff]
        %v1727 = vld [vmem:[#allocation3 + $0xc0] sm:$0xff]
        %v1728 = vld [vmem:[#allocation3 + $0xc8] sm:$0xff]
        %v1729 = vld [vmem:[#allocation3 + $0xd0] sm:$0xff]
        %v1730 = vld [vmem:[#allocation3 + $0xd8] sm:$0xff]
        %v1731 = vld [vmem:[#allocation3 + $0xe0] sm:$0xff]
        %v1732 = vld [vmem:[#allocation3 + $0xe8] sm:$0xff]
        %v1733 = vld [vmem:[#allocation3 + $0xf0] sm:$0xff]
        %v1734 = vld [vmem:[#allocation3 + $0xf8] sm:$0xff]
        %v1735 = vld [vmem:[#allocation3 + $0x100] sm:$0xff]
        %v1736 = vld [vmem:[#allocation3 + $0x108] sm:$0xff]
        %v1737 = vld [vmem:[#allocation3 + $0x110] sm:$0xff]
        %v1738 = vld [vmem:[#allocation3 + $0x118] sm:$0xff]
        %v1739 = vld [vmem:[#allocation3 + $0x120] sm:$0xff]
        %v1740 = vld [vmem:[#allocation3 + $0x128] sm:$0xff]
        %v1741 = vld [vmem:[#allocation3 + $0x130] sm:$0xff]
        %v1742 = vld [vmem:[#allocation3 + $0x138] sm:$0xff]
        %v1743 = vld [vmem:[#allocation3 + $0x140] sm:$0xff]
        %v1744 = vld [vmem:[#allocation3 + $0x148] sm:$0xff]
        %v1745 = vld [vmem:[#allocation3 + $0x150] sm:$0xff]
        %v1746 = vld [vmem:[#allocation3 + $0x158] sm:$0xff]
        %v1747 = vld [vmem:[#allocation3 + $0x160] sm:$0xff]
        %v1748 = vld [vmem:[#allocation3 + $0x168] sm:$0xff]
        %v1749 = vld [vmem:[#allocation3 + $0x170] sm:$0xff]
        %v1750 = vld [vmem:[#allocation3 + $0x178] sm:$0xff]
        %v1751 = vld [vmem:[#allocation3 + $0x180] sm:$0xff]
        %v1752 = vld [vmem:[#allocation3 + $0x188] sm:$0xff]
        %v1753 = vld [vmem:[#allocation3 + $0x190] sm:$0xff]
        %v1754 = vld [vmem:[#allocation3 + $0x198] sm:$0xff]
        %v1755 = vld [vmem:[#allocation3 + $0x1a0] sm:$0xff]
        %v1756 = vld [vmem:[#allocation3 + $0x1a8] sm:$0xff]
        %v1757 = vld [vmem:[#allocation3 + $0x1b0] sm:$0xff]
        %v1758 = vld [vmem:[#allocation3 + $0x1b8] sm:$0xff]
        %v1759 = vld [vmem:[#allocation3 + $0x1c0] sm:$0xff]
        %v1760 = vld [vmem:[#allocation3 + $0x1c8] sm:$0xff]
        %v1761 = vld [vmem:[#allocation3 + $0x1d0] sm:$0xff]
        %v1762 = vld [vmem:[#allocation3 + $0x1d8] sm:$0xff]
        %v1763 = vld [vmem:[#allocation3 + $0x1e0] sm:$0xff]
        %v1764 = vld [vmem:[#allocation3 + $0x1e8] sm:$0xff]
        %v1765 = vld [vmem:[#allocation3 + $0x1f0] sm:$0xff]
        %v1766 = vld [vmem:[#allocation3 + $0x1f8] sm:$0xff]
        %v1767 = vld [vmem:[#allocation5] sm:$0xff]
        %v1768 = vld [vmem:[#allocation5 + $0x8] sm:$0xff]
        %v1769 = vld [vmem:[#allocation5 + $0x10] sm:$0xff]
        %v1770 = vld [vmem:[#allocation5 + $0x18] sm:$0xff]
        %v1771 = vld [vmem:[#allocation5 + $0x20] sm:$0xff]
        %v1772 = vld [vmem:[#allocation5 + $0x28] sm:$0xff]
        %v1773 = vld [vmem:[#allocation5 + $0x30] sm:$0xff]
        %v1774 = vld [vmem:[#allocation5 + $0x38] sm:$0xff]
        %v1775 = vld [vmem:[#allocation5 + $0x40] sm:$0xff]
        %v1776 = vld [vmem:[#allocation5 + $0x48] sm:$0xff]
        %v1777 = vld [vmem:[#allocation5 + $0x50] sm:$0xff]
        %v1778 = vld [vmem:[#allocation5 + $0x58] sm:$0xff]
        %v1779 = vld [vmem:[#allocation5 + $0x60] sm:$0xff]
        %v1780 = vld [vmem:[#allocation5 + $0x68] sm:$0xff]
        %v1781 = vld [vmem:[#allocation5 + $0x70] sm:$0xff]
        %v1782 = vld [vmem:[#allocation5 + $0x78] sm:$0xff]
        %v1783 = vld [vmem:[#allocation5 + $0x80] sm:$0xff]
        %v1784 = vld [vmem:[#allocation5 + $0x88] sm:$0xff]
        %v1785 = vld [vmem:[#allocation5 + $0x90] sm:$0xff]
        %v1786 = vld [vmem:[#allocation5 + $0x98] sm:$0xff]
        %v1787 = vld [vmem:[#allocation5 + $0xa0] sm:$0xff]
        %v1788 = vld [vmem:[#allocation5 + $0xa8] sm:$0xff]
        %v1789 = vld [vmem:[#allocation5 + $0xb0] sm:$0xff]
        %v1790 = vld [vmem:[#allocation5 + $0xb8] sm:$0xff]
        %v1791 = vld [vmem:[#allocation5 + $0xc0] sm:$0xff]
        %v1792 = vld [vmem:[#allocation5 + $0xc8] sm:$0xff]
        %v1793 = vld [vmem:[#allocation5 + $0xd0] sm:$0xff]
        %v1794 = vld [vmem:[#allocation5 + $0xd8] sm:$0xff]
        %v1795 = vld [vmem:[#allocation5 + $0xe0] sm:$0xff]
        %v1796 = vld [vmem:[#allocation5 + $0xe8] sm:$0xff]
        %v1797 = vld [vmem:[#allocation5 + $0xf0] sm:$0xff]
        %v1798 = vld [vmem:[#allocation5 + $0xf8] sm:$0xff]
        %v1799 = vld [vmem:[#allocation5 + $0x100] sm:$0xff]
        %v1800 = vld [vmem:[#allocation5 + $0x108] sm:$0xff]
        %v1801 = vld [vmem:[#allocation5 + $0x110] sm:$0xff]
        %v1802 = vld [vmem:[#allocation5 + $0x118] sm:$0xff]
        %v1803 = vld [vmem:[#allocation5 + $0x120] sm:$0xff]
        %v1804 = vld [vmem:[#allocation5 + $0x128] sm:$0xff]
        %v1805 = vld [vmem:[#allocation5 + $0x130] sm:$0xff]
        %v1806 = vld [vmem:[#allocation5 + $0x138] sm:$0xff]
        %v1807 = vld [vmem:[#allocation5 + $0x140] sm:$0xff]
        %v1808 = vld [vmem:[#allocation5 + $0x148] sm:$0xff]
        %v1809 = vld [vmem:[#allocation5 + $0x150] sm:$0xff]
        %v1810 = vld [vmem:[#allocation5 + $0x158] sm:$0xff]
        %v1811 = vld [vmem:[#allocation5 + $0x160] sm:$0xff]
        %v1812 = vld [vmem:[#allocation5 + $0x168] sm:$0xff]
        %v1813 = vld [vmem:[#allocation5 + $0x170] sm:$0xff]
        %v1814 = vld [vmem:[#allocation5 + $0x178] sm:$0xff]
        %v1815 = vld [vmem:[#allocation5 + $0x180] sm:$0xff]
        %v1816 = vld [vmem:[#allocation5 + $0x188] sm:$0xff]
        %v1817 = vld [vmem:[#allocation5 + $0x190] sm:$0xff]
        %v1818 = vld [vmem:[#allocation5 + $0x198] sm:$0xff]
        %v1819 = vld [vmem:[#allocation5 + $0x1a0] sm:$0xff]
        %v1820 = vld [vmem:[#allocation5 + $0x1a8] sm:$0xff]
        %v1821 = vld [vmem:[#allocation5 + $0x1b0] sm:$0xff]
        %v1822 = vld [vmem:[#allocation5 + $0x1b8] sm:$0xff]
        %v1823 = vld [vmem:[#allocation5 + $0x1c0] sm:$0xff]
        %v1824 = vld [vmem:[#allocation5 + $0x1c8] sm:$0xff]
        %v1825 = vld [vmem:[#allocation5 + $0x1d0] sm:$0xff]
        %v1826 = vld [vmem:[#allocation5 + $0x1d8] sm:$0xff]
        %v1827 = vld [vmem:[#allocation5 + $0x1e0] sm:$0xff]
        %v1828 = vld [vmem:[#allocation5 + $0x1e8] sm:$0xff]
        %v1829 = vld [vmem:[#allocation5 + $0x1f0] sm:$0xff]
        %v1830 = vld [vmem:[#allocation5 + $0x1f8] sm:$0xff]
        %v1831 = vld [vmem:[%s503] sm:$0xf]
        %v1832 = vld [vmem:[%s507] sm:$0x3]
        %s1833 = sld [smem:[#allocation2]]
        %1835 = vst [vmem:[#allocation1] ss:$4 sm:$0xff] %v1702
        %v1836 = vld.sshfl [vmem:[#allocation1] sm:$0xff pattern:$0x73625140]
        %v1837 = vld.sshfl [vmem:[#allocation1 + $0x8] sm:$0xff pattern:$0x73625140]
        %1840 = vmatpush.msra.mxu0 %v1733
        %1841 = vmatpush.msra.mxu0 %v1731
        %1842 = vmatpush.msra.mxu0 %v1729
        %1843 = vmatpush.msra.mxu0 %v1727
        %1844 = vmatpush.msra.mxu0 %v1725
        %1845 = vmatpush.msra.mxu0 %v1723
        %1846 = vmatpush.msra.mxu0 %v1721
        %1847 = vmatpush.msra.mxu0 %v1719
        %1848 = vmatpush.msra.mxu0 %v1717
        %1849 = vmatpush.msra.mxu0 %v1715
        %1850 = vmatpush.msra.mxu0 %v1713
        %1851 = vmatpush.msra.mxu0 %v1711
        %1852 = vmatpush.msra.mxu0 %v1709
        %1853 = vmatpush.msra.mxu0 %v1707
        %1854 = vmatpush.msra.mxu0 %v1705
        %1855 = vmatpush.msra.mxu0 %v1703
        %1856 = vmatmul.f32.gmra.mxu0 %v1836
        %v1857 = vpop.f32.mrf.mxu0
        %v1858 = vadd.f32 0.0, %v1857
        %1859 = vdwg.mxu0
        %1860 = vmatpush.msra.mxu0 %v1765
        %1861 = vmatpush.msra.mxu0 %v1763
        %1862 = vmatpush.msra.mxu0 %v1761
        %1863 = vmatpush.msra.mxu0 %v1759
        %1864 = vmatpush.msra.mxu0 %v1757
        %1865 = vmatpush.msra.mxu0 %v1755
        %1866 = vmatpush.msra.mxu0 %v1753
        %1867 = vmatpush.msra.mxu0 %v1751
        %1868 = vmatpush.msra.mxu0 %v1749
        %1869 = vmatpush.msra.mxu0 %v1747
        %1870 = vmatpush.msra.mxu0 %v1745
        %1871 = vmatpush.msra.mxu0 %v1743
        %1872 = vmatpush.msra.mxu0 %v1741
        %1873 = vmatpush.msra.mxu0 %v1739
        %1874 = vmatpush.msra.mxu0 %v1737
        %1875 = vmatpush.msra.mxu0 %v1735
        %1876 = vmatmul.f32.gmra.mxu0 %v1837
        %v1877 = vpop.f32.mrf.mxu0
        %v1878 = vadd.f32 %v1858, %v1877
        %1879 = vdwg.mxu0
        %1880 = vmatpush.msra.mxu0 %v1734
        %1881 = vmatpush.msra.mxu0 %v1732
        %1882 = vmatpush.msra.mxu0 %v1730
        %1883 = vmatpush.msra.mxu0 %v1728
        %1884 = vmatpush.msra.mxu0 %v1726
        %1885 = vmatpush.msra.mxu0 %v1724
        %1886 = vmatpush.msra.mxu0 %v1722
        %1887 = vmatpush.msra.mxu0 %v1720
        %1888 = vmatpush.msra.mxu0 %v1718
        %1889 = vmatpush.msra.mxu0 %v1716
        %1890 = vmatpush.msra.mxu0 %v1714
        %1891 = vmatpush.msra.mxu0 %v1712
        %1892 = vmatpush.msra.mxu0 %v1710
        %1893 = vmatpush.msra.mxu0 %v1708
        %1894 = vmatpush.msra.mxu0 %v1706
        %1895 = vmatpush.msra.mxu0 %v1704
        %1896 = vmatmul.f32.gmra.mxu0 %v1836
        %v1897 = vpop.f32.mrf.mxu0
        %v1898 = vadd.f32 0.0, %v1897
        %1899 = vdwg.mxu0
        %1900 = vmatpush.msra.mxu0 %v1766
        %1901 = vmatpush.msra.mxu0 %v1764
        %1902 = vmatpush.msra.mxu0 %v1762
        %1903 = vmatpush.msra.mxu0 %v1760
        %1904 = vmatpush.msra.mxu0 %v1758
        %1905 = vmatpush.msra.mxu0 %v1756
        %1906 = vmatpush.msra.mxu0 %v1754
        %1907 = vmatpush.msra.mxu0 %v1752
        %1908 = vmatpush.msra.mxu0 %v1750
        %1909 = vmatpush.msra.mxu0 %v1748
        %1910 = vmatpush.msra.mxu0 %v1746
        %1911 = vmatpush.msra.mxu0 %v1744
        %1912 = vmatpush.msra.mxu0 %v1742
        %1913 = vmatpush.msra.mxu0 %v1740
        %1914 = vmatpush.msra.mxu0 %v1738
        %1915 = vmatpush.msra.mxu0 %v1736
        %1916 = vmatmul.f32.gmra.mxu0 %v1837
        %v1917 = vpop.f32.mrf.mxu0
        %v1918 = vadd.f32 %v1898, %v1917
        %1919 = vdwg.mxu0
        %1920 = vst [vmem:[#allocation1] ss:$4 sm:$0xff] %v1702
        %v1921 = vld.sshfl [vmem:[#allocation1] sm:$0xff pattern:$0x73625140]
        %v1922 = vld.sshfl [vmem:[#allocation1 + $0x8] sm:$0xff pattern:$0x73625140]
        %1925 = vmatpush.msra.mxu0 %v1797
        %1926 = vmatpush.msra.mxu0 %v1795
        %1927 = vmatpush.msra.mxu0 %v1793
        %1928 = vmatpush.msra.mxu0 %v1791
        %1929 = vmatpush.msra.mxu0 %v1789
        %1930 = vmatpush.msra.mxu0 %v1787
        %1931 = vmatpush.msra.mxu0 %v1785
        %1932 = vmatpush.msra.mxu0 %v1783
        %1933 = vmatpush.msra.mxu0 %v1781
        %1934 = vmatpush.msra.mxu0 %v1779
        %1935 = vmatpush.msra.mxu0 %v1777
        %1936 = vmatpush.msra.mxu0 %v1775
        %1937 = vmatpush.msra.mxu0 %v1773
        %1938 = vmatpush.msra.mxu0 %v1771
        %1939 = vmatpush.msra.mxu0 %v1769
        %1940 = vmatpush.msra.mxu0 %v1767
        %1941 = vmatmul.f32.gmra.mxu0 %v1921
        %v1942 = vpop.f32.mrf.mxu0
        %v1943 = vadd.f32 0.0, %v1942
        %1944 = vdwg.mxu0
        %1945 = vmatpush.msra.mxu0 %v1829
        %1946 = vmatpush.msra.mxu0 %v1827
        %1947 = vmatpush.msra.mxu0 %v1825
        %1948 = vmatpush.msra.mxu0 %v1823
        %1949 = vmatpush.msra.mxu0 %v1821
        %1950 = vmatpush.msra.mxu0 %v1819
        %1951 = vmatpush.msra.mxu0 %v1817
        %1952 = vmatpush.msra.mxu0 %v1815
        %1953 = vmatpush.msra.mxu0 %v1813
        %1954 = vmatpush.msra.mxu0 %v1811
        %1955 = vmatpush.msra.mxu0 %v1809
        %1956 = vmatpush.msra.mxu0 %v1807
        %1957 = vmatpush.msra.mxu0 %v1805
        %1958 = vmatpush.msra.mxu0 %v1803
        %1959 = vmatpush.msra.mxu0 %v1801
        %1960 = vmatpush.msra.mxu0 %v1799
        %1961 = vmatmul.f32.gmra.mxu0 %v1922
        %v1962 = vpop.f32.mrf.mxu0
        %v1963 = vadd.f32 %v1943, %v1962
        %1964 = vdwg.mxu0
        %1965 = vmatpush.msra.mxu0 %v1798
        %1966 = vmatpush.msra.mxu0 %v1796
        %1967 = vmatpush.msra.mxu0 %v1794
        %1968 = vmatpush.msra.mxu0 %v1792
        %1969 = vmatpush.msra.mxu0 %v1790
        %1970 = vmatpush.msra.mxu0 %v1788
        %1971 = vmatpush.msra.mxu0 %v1786
        %1972 = vmatpush.msra.mxu0 %v1784
        %1973 = vmatpush.msra.mxu0 %v1782
        %1974 = vmatpush.msra.mxu0 %v1780
        %1975 = vmatpush.msra.mxu0 %v1778
        %1976 = vmatpush.msra.mxu0 %v1776
        %1977 = vmatpush.msra.mxu0 %v1774
        %1978 = vmatpush.msra.mxu0 %v1772
        %1979 = vmatpush.msra.mxu0 %v1770
        %1980 = vmatpush.msra.mxu0 %v1768
        %1981 = vmatmul.f32.gmra.mxu0 %v1921
        %v1982 = vpop.f32.mrf.mxu0
        %v1983 = vadd.f32 0.0, %v1982
        %1984 = vdwg.mxu0
        %1985 = vmatpush.msra.mxu0 %v1830
        %1986 = vmatpush.msra.mxu0 %v1828
        %1987 = vmatpush.msra.mxu0 %v1826
        %1988 = vmatpush.msra.mxu0 %v1824
        %1989 = vmatpush.msra.mxu0 %v1822
        %1990 = vmatpush.msra.mxu0 %v1820
        %1991 = vmatpush.msra.mxu0 %v1818
        %1992 = vmatpush.msra.mxu0 %v1816
        %1993 = vmatpush.msra.mxu0 %v1814
        %1994 = vmatpush.msra.mxu0 %v1812
        %1995 = vmatpush.msra.mxu0 %v1810
        %1996 = vmatpush.msra.mxu0 %v1808
        %1997 = vmatpush.msra.mxu0 %v1806
        %1998 = vmatpush.msra.mxu0 %v1804
        %1999 = vmatpush.msra.mxu0 %v1802
        %2000 = vmatpush.msra.mxu0 %v1800
        %2001 = vmatmul.f32.gmra.mxu0 %v1922
        %v2002 = vpop.f32.mrf.mxu0
        %v2003 = vadd.f32 %v1983, %v2002
        %2004 = vdwg.mxu0
        %v2007 = vrot.slane %v1963, 1
        %v2008 = vrot.slane %v2003, 1
        %v2011 = vsub.f32 %v1878, %v2007
        %v2012 = vsub.f32 %v1918, %v2008
        %v2015 = vrot.slane %v1878, 1
        %v2016 = vrot.slane %v1918, 1
        %v2019 = vadd.f32 %v1963, %v2015
        %v2020 = vadd.f32 %v2003, %v2016
        %v2023 = vrot.slane %v2012, 7
        %vm2024 = vcmask 1040384
        %v2025 = vsel %vm2024, %v2011, %v2023
        %v2027 = vmul.f32 %v1832, %v2025
        %v2030 = vunpack.c.l.s4 857870592
        %v2031 = vunpack.c.0.s8 %v2030
        %v2032 = vperm.slane %v2027, %v2031
        %v2034 = vsub.f32 %v1831, %v2032
        %v2037 = vrot.slane %v2020, 7
        %v2038 = vsel %vm2024, %v2019, %v2037
        %v2040 = vmul.f32 %v1832, %v2038
        %v2043 = vunpack.c.l.s4 857870592
        %v2044 = vunpack.c.0.s8 %v2043
        %v2045 = vperm.slane %v2040, %v2044
        %v2047 = vsub.f32 %v1831, %v2045
        %v2049 = vperm.slane %v2034, 0
        %v2050 = vperm.slane %v2034, 2
        %v2054 = vperm.slane %v2047, 1
        %v2055 = vperm.slane %v2047, 3
        %v2058 = vsel %vm2024, %v2049, %v2054
        %v2059 = vsel %vm2024, %v2050, %v2055
        %2060 = vmatpush.msra.mxu0 %v1733
        %2061 = vmatpush.msra.mxu0 %v1731
        %2062 = vmatpush.msra.mxu0 %v1729
        %2063 = vmatpush.msra.mxu0 %v1727
        %2064 = vmatpush.msra.mxu0 %v1725
        %2065 = vmatpush.msra.mxu0 %v1723
        %2066 = vmatpush.msra.mxu0 %v1721
        %2067 = vmatpush.msra.mxu0 %v1719
        %2068 = vmatpush.msra.mxu0 %v1717
        %2069 = vmatpush.msra.mxu0 %v1715
        %2070 = vmatpush.msra.mxu0 %v1713
        %2071 = vmatpush.msra.mxu0 %v1711
        %2072 = vmatpush.msra.mxu0 %v1709
        %2073 = vmatpush.msra.mxu0 %v1707
        %2074 = vmatpush.msra.mxu0 %v1705
        %2075 = vmatpush.msra.mxu0 %v1703
        %2076 = vmatmul.f32.gmra.mxu0 %v2058
        %v2077 = vpop.f32.mrf.mxu0
        %v2078 = vadd.f32 0.0, %v2077
        %2079 = vdwg.mxu0
        %2080 = vmatpush.msra.mxu0 %v1765
        %2081 = vmatpush.msra.mxu0 %v1763
        %2082 = vmatpush.msra.mxu0 %v1761
        %2083 = vmatpush.msra.mxu0 %v1759
        %2084 = vmatpush.msra.mxu0 %v1757
        %2085 = vmatpush.msra.mxu0 %v1755
        %2086 = vmatpush.msra.mxu0 %v1753
        %2087 = vmatpush.msra.mxu0 %v1751
        %2088 = vmatpush.msra.mxu0 %v1749
        %2089 = vmatpush.msra.mxu0 %v1747
        %2090 = vmatpush.msra.mxu0 %v1745
        %2091 = vmatpush.msra.mxu0 %v1743
        %2092 = vmatpush.msra.mxu0 %v1741
        %2093 = vmatpush.msra.mxu0 %v1739
        %2094 = vmatpush.msra.mxu0 %v1737
        %2095 = vmatpush.msra.mxu0 %v1735
        %2096 = vmatmul.f32.gmra.mxu0 %v2059
        %v2097 = vpop.f32.mrf.mxu0
        %v2098 = vadd.f32 %v2078, %v2097
        %2099 = vdwg.mxu0
        %2100 = vmatpush.msra.mxu0 %v1734
        %2101 = vmatpush.msra.mxu0 %v1732
        %2102 = vmatpush.msra.mxu0 %v1730
        %2103 = vmatpush.msra.mxu0 %v1728
        %2104 = vmatpush.msra.mxu0 %v1726
        %2105 = vmatpush.msra.mxu0 %v1724
        %2106 = vmatpush.msra.mxu0 %v1722
        %2107 = vmatpush.msra.mxu0 %v1720
        %2108 = vmatpush.msra.mxu0 %v1718
        %2109 = vmatpush.msra.mxu0 %v1716
        %2110 = vmatpush.msra.mxu0 %v1714
        %2111 = vmatpush.msra.mxu0 %v1712
        %2112 = vmatpush.msra.mxu0 %v1710
        %2113 = vmatpush.msra.mxu0 %v1708
        %2114 = vmatpush.msra.mxu0 %v1706
        %2115 = vmatpush.msra.mxu0 %v1704
        %2116 = vmatmul.f32.gmra.mxu0 %v2058
        %v2117 = vpop.f32.mrf.mxu0
        %v2118 = vadd.f32 0.0, %v2117
        %2119 = vdwg.mxu0
        %2120 = vmatpush.msra.mxu0 %v1766
        %2121 = vmatpush.msra.mxu0 %v1764
        %2122 = vmatpush.msra.mxu0 %v1762
        %2123 = vmatpush.msra.mxu0 %v1760
        %2124 = vmatpush.msra.mxu0 %v1758
        %2125 = vmatpush.msra.mxu0 %v1756
        %2126 = vmatpush.msra.mxu0 %v1754
        %2127 = vmatpush.msra.mxu0 %v1752
        %2128 = vmatpush.msra.mxu0 %v1750
        %2129 = vmatpush.msra.mxu0 %v1748
        %2130 = vmatpush.msra.mxu0 %v1746
        %2131 = vmatpush.msra.mxu0 %v1744
        %2132 = vmatpush.msra.mxu0 %v1742
        %2133 = vmatpush.msra.mxu0 %v1740
        %2134 = vmatpush.msra.mxu0 %v1738
        %2135 = vmatpush.msra.mxu0 %v1736
        %2136 = vmatmul.f32.gmra.mxu0 %v2059
        %v2137 = vpop.f32.mrf.mxu0
        %v2138 = vadd.f32 %v2118, %v2137
        %2139 = vdwg.mxu0
        %2140 = vmatpush.msra.mxu0 %v1797
        %2141 = vmatpush.msra.mxu0 %v1795
        %2142 = vmatpush.msra.mxu0 %v1793
        %2143 = vmatpush.msra.mxu0 %v1791
        %2144 = vmatpush.msra.mxu0 %v1789
        %2145 = vmatpush.msra.mxu0 %v1787
        %2146 = vmatpush.msra.mxu0 %v1785
        %2147 = vmatpush.msra.mxu0 %v1783
        %2148 = vmatpush.msra.mxu0 %v1781
        %2149 = vmatpush.msra.mxu0 %v1779
        %2150 = vmatpush.msra.mxu0 %v1777
        %2151 = vmatpush.msra.mxu0 %v1775
        %2152 = vmatpush.msra.mxu0 %v1773
        %2153 = vmatpush.msra.mxu0 %v1771
        %2154 = vmatpush.msra.mxu0 %v1769
        %2155 = vmatpush.msra.mxu0 %v1767
        %2156 = vmatmul.f32.gmra.mxu0 %v2058
        %v2157 = vpop.f32.mrf.mxu0
        %v2158 = vadd.f32 0.0, %v2157
        %2159 = vdwg.mxu0
        %2160 = vmatpush.msra.mxu0 %v1829
        %2161 = vmatpush.msra.mxu0 %v1827
        %2162 = vmatpush.msra.mxu0 %v1825
        %2163 = vmatpush.msra.mxu0 %v1823
        %2164 = vmatpush.msra.mxu0 %v1821
        %2165 = vmatpush.msra.mxu0 %v1819
        %2166 = vmatpush.msra.mxu0 %v1817
        %2167 = vmatpush.msra.mxu0 %v1815
        %2168 = vmatpush.msra.mxu0 %v1813
        %2169 = vmatpush.msra.mxu0 %v1811
        %2170 = vmatpush.msra.mxu0 %v1809
        %2171 = vmatpush.msra.mxu0 %v1807
        %2172 = vmatpush.msra.mxu0 %v1805
        %2173 = vmatpush.msra.mxu0 %v1803
        %2174 = vmatpush.msra.mxu0 %v1801
        %2175 = vmatpush.msra.mxu0 %v1799
        %2176 = vmatmul.f32.gmra.mxu0 %v2059
        %v2177 = vpop.f32.mrf.mxu0
        %v2178 = vadd.f32 %v2158, %v2177
        %2179 = vdwg.mxu0
        %2180 = vmatpush.msra.mxu0 %v1798
        %2181 = vmatpush.msra.mxu0 %v1796
        %2182 = vmatpush.msra.mxu0 %v1794
        %2183 = vmatpush.msra.mxu0 %v1792
        %2184 = vmatpush.msra.mxu0 %v1790
        %2185 = vmatpush.msra.mxu0 %v1788
        %2186 = vmatpush.msra.mxu0 %v1786
        %2187 = vmatpush.msra.mxu0 %v1784
        %2188 = vmatpush.msra.mxu0 %v1782
        %2189 = vmatpush.msra.mxu0 %v1780
        %2190 = vmatpush.msra.mxu0 %v1778
        %2191 = vmatpush.msra.mxu0 %v1776
        %2192 = vmatpush.msra.mxu0 %v1774
        %2193 = vmatpush.msra.mxu0 %v1772
        %2194 = vmatpush.msra.mxu0 %v1770
        %2195 = vmatpush.msra.mxu0 %v1768
        %2196 = vmatmul.f32.gmra.mxu0 %v2058
        %v2197 = vpop.f32.mrf.mxu0
        %v2198 = vadd.f32 0.0, %v2197
        %2199 = vdwg.mxu0
        %2200 = vmatpush.msra.mxu0 %v1830
        %2201 = vmatpush.msra.mxu0 %v1828
        %2202 = vmatpush.msra.mxu0 %v1826
        %2203 = vmatpush.msra.mxu0 %v1824
        %2204 = vmatpush.msra.mxu0 %v1822
        %2205 = vmatpush.msra.mxu0 %v1820
        %2206 = vmatpush.msra.mxu0 %v1818
        %2207 = vmatpush.msra.mxu0 %v1816
        %2208 = vmatpush.msra.mxu0 %v1814
        %2209 = vmatpush.msra.mxu0 %v1812
        %2210 = vmatpush.msra.mxu0 %v1810
        %2211 = vmatpush.msra.mxu0 %v1808
        %2212 = vmatpush.msra.mxu0 %v1806
        %2213 = vmatpush.msra.mxu0 %v1804
        %2214 = vmatpush.msra.mxu0 %v1802
        %2215 = vmatpush.msra.mxu0 %v1800
        %2216 = vmatmul.f32.gmra.mxu0 %v2059
        %v2217 = vpop.f32.mrf.mxu0
        %v2218 = vadd.f32 %v2198, %v2217
        %2219 = vdwg.mxu0
        %v2222 = vrot.slane %v2178, 1
        %v2223 = vrot.slane %v2218, 1
        %v2226 = vadd.f32 %v2098, %v2222
        %v2227 = vadd.f32 %v2138, %v2223
        %v2228 = vrot.slane %v2178, 7
        %v2229 = vrot.slane %v2218, 7
        %v2232 = vsub.f32 %v2098, %v2228
        %v2233 = vsub.f32 %v2138, %v2229
        %v2234 = vsel %vm2024, %v2226, %v2232
        %v2235 = vsel %vm2024, %v2227, %v2233
        %v2236 = vstv %s1833
        %v2237 = vmul.f32 %v2236, %v2234
        %v2238 = vmul.f32 %v2236, %v2235
        %v2241 = vrot.slane %v2238, 6
        %v2242 = vsel %vm698, %v2237, %v2241
        %v2244 = vadd.f32 %v1702, %v2242
        %2245 = vst [vmem:[%s512] sm:$0xf] %v2244
        %p2246 = scmp.lt.s32.totalorder %s27, 1
        %s2247 = scalar_select %p2246, %s27, 1
        %s2248 = smul.addr %s2247, 2
        %s2249 = smul.addr %s2248, 2
        %s2250 = scalar_lea.vmem %s13, %s2249
        // Predicated region
        $region81: #{dccnn_forward.2} parent=71 // pred_check
          %p2251 = pneg %p333
        $region82: #{dccnn_forward.2} parent=71 // pred_check_branch
          %2253 = sbr.rel (%p2251) target = $region84
        $region83: #{dccnn_forward.2} parent=71 // pred_region
          _
        $region84: #{dccnn_forward.2} parent=71 // pred_fallthru
          _
      $region72: #{dccnn_forward.2} parent=5 // pred_fallthru
        _
      %p2254 = scmp.le.s32.totalorder 2, %s22
      // Predicated region
      $region85: #{dccnn_forward.2} parent=5 // pred_check
        %p2255 = pneg %p2254
      $region86: #{dccnn_forward.2} parent=5 // pred_check_branch
        %2257 = sbr.rel (%p2255) target = $region88
      $region87: #{dccnn_forward.2} parent=5 // pred_region
        %s2258 = ssub.s32 %s22, 2
        // Predicated region
        $region89: #{dccnn_forward.2} parent=87 // pred_check
          %p2259 = pneg %p339
        $region90: #{dccnn_forward.2} parent=87 // pred_check_branch
          %2261 = sbr.rel (%p2259) target = $region92
        $region91: #{dccnn_forward.2} parent=87 // pred_region
          %p2262 = scmp.lt.s32.totalorder %s28, 1
          %s2263 = scalar_select %p2262, %s28, 1
          %s2264 = smul.addr %s2263, 2
          %s2265 = smul.addr %s2264, 2
          %s2266 = scalar_lea.vmem %s13, %s2265
        $region92: #{dccnn_forward.2} parent=87 // pred_fallthru
          _
      $region88: #{dccnn_forward.2} parent=5 // pred_fallthru
        _
    $region6: #{dccnn_forward.2} parent=1 // loop_footer
      %s26 = sadd.s32 1, %s22
    $region7: #{dccnn_forward.2} parent=1 // loop_footer_branch
      %21 = sbr.rel target = $region3
    $region8: #{dccnn_forward.2} parent=1 // loop_exit
      _
    %2267 = vsyncpa [#allocation4], 1
    %s2268 = scalar_lea.sflag [#allocation4], 1
    %2269 = vsyncpa %s2268, 1
    %2270 = vsyncpa [#allocation6], 1

</llo_original>
